<compile_context>
chip_gen: v7x
topology: tpu7x:2x2x1
jax: 0.10.0
libtpu: 0.0.40
codegen_flags: <defaults>
</compile_context>

<pallas_src>
import jax
import jax.numpy as jnp
from jax.experimental import pallas as pl
from jax.experimental.pallas import tpu as pltpu


def _round_up(x, m):
    return ((x + m - 1) // m) * m


def _mlp_kernel(v_ref, l_ref, w0_ref, b0_ref, w1_ref, b1_ref, w2_ref, b2_ref,
                o_ref):
    # Layer 0: one fused K=2F MXU dot.  The concat of two F-lane slabs is a
    # cheap in-VMEM copy; fusing halves layer-0 vmatmul pushes vs. two K=F
    # dots that each pad K up to the full MXU contraction depth.
    x = jnp.concatenate([v_ref[...], l_ref[...]], axis=-1)
    h0 = jnp.dot(x.astype(w0_ref.dtype), w0_ref[...],
                 preferred_element_type=jnp.float32)
    h0 = h0 + b0_ref[...]
    h0 = h0 * jax.nn.sigmoid(h0)          # SiLU in f32 (v5e has no bf16 VPU/EUP)

    # Layer 1 (1024 -> 512): mxu_dtype operands, f32 accumulation.
    h1 = jnp.dot(h0.astype(w1_ref.dtype), w1_ref[...],
                 preferred_element_type=jnp.float32)
    h1 = h1 + b1_ref[...]
    h1 = h1 * jax.nn.sigmoid(h1)          # SiLU in f32

    # Layer 2 (512 -> 1): VPU multiply + cross-lane (XLU) reduce instead of a
    # 1-lane-wide MXU pass with a lane-padded (512, 1) weight.
    out = jnp.sum(h1 * w2_ref[...], axis=-1, keepdims=True) + b2_ref[...]
    o_ref[...] = out.astype(o_ref.dtype)


def symmetric_estimator_silu(visual, language, params, *, tb=512,
                             mxu_dtype=jnp.bfloat16):
    """visual, language: [B, in_feature] float32. Returns [B, 1] float32."""
    w0, b0, w1, b1, w2, b2 = params
    B, F = visual.shape
    assert language.shape == (B, F)

    # ---- batch tiling: full batch in one tile when it fits, else a multiple
    # of 8 (f32 sublane granule) with partial edge blocks handled by Pallas.
    granule = 8
    tb_cap = max(granule, (int(tb) // granule) * granule)
    tb_eff = B if B <= tb_cap else tb_cap
    grid = pl.cdiv(B, tb_eff)

    # ---- operand prep (weights only; constant-folds under jax.jit). The
    # activations are passed through untouched: no astype/pad HBM round trip.
    w0c = w0.astype(mxu_dtype)                       # (2F, 1024)
    w1c = w1.astype(mxu_dtype)                       # (1024, 512)
    w2r = w2.reshape(1, -1).astype(jnp.float32)      # (1, 512) dense row (VPU path)
    b0r = b0.reshape(1, -1).astype(jnp.float32)
    b1r = b1.reshape(1, -1).astype(jnp.float32)
    b2r = b2.reshape(1, 1).astype(jnp.float32)

    # ---- explicit VMEM budget (scoped defaults: 16 MiB v5e, 32 MiB v6e/v7x).
    itm = jnp.dtype(mxu_dtype).itemsize
    weight_bytes = (w0c.size + w1c.size) * itm \
        + (b0r.size + b1r.size + w2r.size + b2r.size) * 4
    in_bytes = 2 * 2 * tb_eff * F * 4                # visual+language f32, 2 bufs
    out_bytes = 2 * tb_eff * 4
    live_bytes = tb_eff * (2 * F * itm                # x (concat, mxu dtype)
                           + 1024 * 4 + 1024 * itm    # h0 f32 + mxu copy
                           + 512 * 4 + 512 * itm)     # h1 f32 + slack
    vmem_limit = int(min(max(2 * weight_bytes + in_bytes + out_bytes
                             + live_bytes + (8 << 20), 16 << 20), 32 << 20))

    # ---- advisory cost so XLA overlaps surrounding ops with the custom call.
    cost = pl.CostEstimate(
        flops=2 * B * (2 * F * 1024 + 1024 * 512 + 512),
        transcendentals=B * (1024 + 512),
        bytes_accessed=int((2 * B * F + B) * 4 + weight_bytes),
    )

    return pl.pallas_call(
        _mlp_kernel,
        out_shape=jax.ShapeDtypeStruct((B, 1), jnp.float32),
        grid=(grid,),
        in_specs=[
            pl.BlockSpec((tb_eff, F), lambda i: (i, 0)),     # visual tile
            pl.BlockSpec((tb_eff, F), lambda i: (i, 0)),     # language tile
            pl.BlockSpec(w0c.shape, lambda i: (0, 0)),       # constant weights
            pl.BlockSpec(b0r.shape, lambda i: (0, 0)),
            pl.BlockSpec(w1c.shape, lambda i: (0, 0)),
            pl.BlockSpec(b1r.shape, lambda i: (0, 0)),
            pl.BlockSpec(w2r.shape, lambda i: (0, 0)),
            pl.BlockSpec(b2r.shape, lambda i: (0, 0)),
        ],
        out_specs=pl.BlockSpec((tb_eff, 1), lambda i: (i, 0)),
        compiler_params=pltpu.CompilerParams(
            dimension_semantics=("parallel",),
            vmem_limit_bytes=vmem_limit),
        cost_estimate=cost,
    )(visual, language, w0c, b0r, w1c, b1r, w2r, b2r)


def init_params(key, in_feature):
    """Layer shapes matching the module; weights stored pre-transposed as (in, out)."""
    dims = [(in_feature * 2, 1024), (1024, 512), (512, 1)]
    params = []
    for din, dout in dims:
        kw, kb, key = jax.random.split(key, 3)
        bound = 1.0 / jnp.sqrt(din)
        w = jax.random.uniform(kw, (din, dout), jnp.float32, -bound, bound)
        b = jax.random.uniform(kb, (dout,), jnp.float32, -bound, bound)
        params += [w, b]
    return tuple(params)


def _reference(visual, language, params):
    w0, b0, w1, b1, w2, b2 = params
    x = jnp.concatenate((visual, language), axis=-1)
    h = jax.nn.silu(x @ w0 + b0)
    h = jax.nn.silu(h @ w1 + b1)
    return h @ w2 + b2


if __name__ == "__main__":
    key = jax.random.PRNGKey(0)
    k1, k2, k3, k4, k5 = jax.random.split(key, 5)

    in_feature = 32
    params = init_params(k3, in_feature)

    # jit the wrapper so the trace-time weight casts/reshapes constant-fold
    # instead of re-running as standalone XLA ops every call.
    fwd = jax.jit(lambda v, l: symmetric_estimator_silu(v, l, params))
    fwd_f32 = jax.jit(lambda v, l: symmetric_estimator_silu(
        v, l, params, mxu_dtype=jnp.float32))
    fwd_t16 = jax.jit(lambda v, l: symmetric_estimator_silu(v, l, params, tb=16))

    # Case 1: tiny batch (single grid step, block == full batch).
    v1 = jax.random.normal(k1, (8, in_feature), jnp.float32)
    l1 = jax.random.normal(k2, (8, in_feature), jnp.float32)
    out1 = jax.block_until_ready(fwd(v1, l1))
    ref1 = _reference(v1, l1, params)
    assert out1.shape == (8, 1)
    assert jnp.allclose(out1, ref1, atol=2e-2, rtol=2e-2)   # bf16 MXU tolerance

    # Same inputs through the f32 MXU path: must match the reference tightly.
    out1_f32 = jax.block_until_ready(fwd_f32(v1, l1))
    assert jnp.allclose(out1_f32, ref1, atol=1e-4, rtol=1e-4)

    # Case 2: batch not divisible by the tile (partial edge blocks, multi-step grid).
    v2 = jax.random.normal(k4, (40, in_feature), jnp.float32)
    l2 = jax.random.normal(k5, (40, in_feature), jnp.float32)
    out2 = jax.block_until_ready(fwd_t16(v2, l2))
    ref2 = _reference(v2, l2, params)
    assert out2.shape == (40, 1)
    assert jnp.allclose(out2, ref2, atol=2e-2, rtol=2e-2)

    print("KERNEL_OK")
</pallas_src>

<mosaic_0001>
module attributes {stable_mosaic.version = 11 : i64} {
  func.func @_mlp_kernel(%arg0: i32, %arg1: memref<8x32xf32, #tpu.memory_space<vmem>>, %arg2: memref<8x32xf32, #tpu.memory_space<vmem>>, %arg3: memref<64x1024xbf16, #tpu.memory_space<vmem>>, %arg4: memref<1x1024xf32, #tpu.memory_space<vmem>>, %arg5: memref<1024x512xbf16, #tpu.memory_space<vmem>>, %arg6: memref<1x512xf32, #tpu.memory_space<vmem>>, %arg7: memref<1x512xf32, #tpu.memory_space<vmem>>, %arg8: memref<1x1xf32, #tpu.memory_space<vmem>>, %arg9: memref<8x1xf32, #tpu.memory_space<vmem>>) attributes {dimension_semantics = [#tpu.dimension_semantics<parallel>], iteration_bounds = array<i64: 1>, scalar_prefetch = 0 : i64, scratch_operands = 0 : i64, tpu.core_type = #tpu.core_type<tc>, window_params = [{transform_indices = @transform_0, window_bounds = array<i64: 8, 32>}, {transform_indices = @transform_1, window_bounds = array<i64: 8, 32>}, {pipeline_mode = #tpu.pipeline_mode<synchronous>, transform_indices = @transform_2, window_bounds = array<i64: 64, 1024>}, {pipeline_mode = #tpu.pipeline_mode<synchronous>, transform_indices = @transform_3, window_bounds = array<i64: 1, 1024>}, {pipeline_mode = #tpu.pipeline_mode<synchronous>, transform_indices = @transform_4, window_bounds = array<i64: 1024, 512>}, {pipeline_mode = #tpu.pipeline_mode<synchronous>, transform_indices = @transform_5, window_bounds = array<i64: 1, 512>}, {pipeline_mode = #tpu.pipeline_mode<synchronous>, transform_indices = @transform_6, window_bounds = array<i64: 1, 512>}, {pipeline_mode = #tpu.pipeline_mode<synchronous>, transform_indices = @transform_7, window_bounds = array<i64: 1, 1>}, {transform_indices = @transform_8, window_bounds = array<i64: 8, 1>}]} {
    %c0 = arith.constant 0 : index
    %c0_0 = arith.constant 0 : index
    %0 = vector.load %arg1[%c0, %c0_0] : memref<8x32xf32, #tpu.memory_space<vmem>>, vector<8x32xf32>
    %c0_1 = arith.constant 0 : index
    %c0_2 = arith.constant 0 : index
    %1 = vector.load %arg2[%c0_1, %c0_2] : memref<8x32xf32, #tpu.memory_space<vmem>>, vector<8x32xf32>
    %2 = tpu.concatenate %0, %1 in 1 : vector<8x32xf32>, vector<8x32xf32> -> vector<8x64xf32>
    %3 = arith.truncf %2 : vector<8x64xf32> to vector<8x64xbf16>
    %c0_3 = arith.constant 0 : index
    %c0_4 = arith.constant 0 : index
    %4 = vector.load %arg3[%c0_3, %c0_4] : memref<64x1024xbf16, #tpu.memory_space<vmem>>, vector<64x1024xbf16>
    %cst = arith.constant dense<0.000000e+00> : vector<8x1024xf32>
    %5 = tpu.matmul %3, %4, %cst {dimension_numbers = #tpu.dot_dimension_numbers<[1], [0], [0], [1], [0, 0, 1, 1], [], []>} : vector<8x64xbf16>, vector<64x1024xbf16>, vector<8x1024xf32> -> vector<8x1024xf32>
    %c0_5 = arith.constant 0 : index
    %c0_6 = arith.constant 0 : index
    %6 = vector.load %arg4[%c0_5, %c0_6] : memref<1x1024xf32, #tpu.memory_space<vmem>>, vector<1x1024xf32>
    %7 = vector.broadcast %6 : vector<1x1024xf32> to vector<8x1024xf32>
    %8 = arith.addf %5, %7 : vector<8x1024xf32>
    %9 = arith.negf %8 : vector<8x1024xf32>
    %10 = math.exp %9 : vector<8x1024xf32>
    %cst_7 = arith.constant 1.000000e+00 : f32
    %11 = vector.broadcast %cst_7 : f32 to vector<8x1024xf32>
    %12 = arith.addf %11, %10 : vector<8x1024xf32>
    %13 = arith.divf %11, %12 : vector<8x1024xf32>
    %14 = arith.mulf %8, %13 : vector<8x1024xf32>
    %15 = arith.truncf %14 : vector<8x1024xf32> to vector<8x1024xbf16>
    %c0_8 = arith.constant 0 : index
    %c0_9 = arith.constant 0 : index
    %16 = vector.load %arg5[%c0_8, %c0_9] : memref<1024x512xbf16, #tpu.memory_space<vmem>>, vector<1024x512xbf16>
    %cst_10 = arith.constant dense<0.000000e+00> : vector<8x512xf32>
    %17 = tpu.matmul %15, %16, %cst_10 {dimension_numbers = #tpu.dot_dimension_numbers<[1], [0], [0], [1], [0, 0, 1, 1], [], []>} : vector<8x1024xbf16>, vector<1024x512xbf16>, vector<8x512xf32> -> vector<8x512xf32>
    %c0_11 = arith.constant 0 : index
    %c0_12 = arith.constant 0 : index
    %18 = vector.load %arg6[%c0_11, %c0_12] : memref<1x512xf32, #tpu.memory_space<vmem>>, vector<1x512xf32>
    %19 = vector.broadcast %18 : vector<1x512xf32> to vector<8x512xf32>
    %20 = arith.addf %17, %19 : vector<8x512xf32>
    %21 = arith.negf %20 : vector<8x512xf32>
    %22 = math.exp %21 : vector<8x512xf32>
    %cst_13 = arith.constant 1.000000e+00 : f32
    %23 = vector.broadcast %cst_13 : f32 to vector<8x512xf32>
    %24 = arith.addf %23, %22 : vector<8x512xf32>
    %25 = arith.divf %23, %24 : vector<8x512xf32>
    %26 = arith.mulf %20, %25 : vector<8x512xf32>
    %c0_14 = arith.constant 0 : index
    %c0_15 = arith.constant 0 : index
    %27 = vector.load %arg7[%c0_14, %c0_15] : memref<1x512xf32, #tpu.memory_space<vmem>>, vector<1x512xf32>
    %28 = vector.broadcast %27 : vector<1x512xf32> to vector<8x512xf32>
    %29 = arith.mulf %26, %28 : vector<8x512xf32>
    %cst_16 = arith.constant dense<0.000000e+00> : vector<8xf32>
    %30 = vector.multi_reduction <add>, %29, %cst_16 [1] : vector<8x512xf32> to vector<8xf32>
    %31 = vector.shape_cast %30 : vector<8xf32> to vector<8x1xf32>
    %c0_17 = arith.constant 0 : index
    %c0_18 = arith.constant 0 : index
    %32 = vector.load %arg8[%c0_17, %c0_18] : memref<1x1xf32, #tpu.memory_space<vmem>>, vector<1x1xf32>
    %33 = vector.broadcast %32 : vector<1x1xf32> to vector<8x1xf32>
    %34 = arith.addf %31, %33 : vector<8x1xf32>
    %c0_19 = arith.constant 0 : index
    %c0_20 = arith.constant 0 : index
    %35 = vector.load %arg9[%c0_19, %c0_20] : memref<8x1xf32, #tpu.memory_space<vmem>>, vector<8x1xf32>
    tpu.vector_store %arg9[%c0_19, %c0_20], %34 {strides = array<i32>} : memref<8x1xf32, #tpu.memory_space<vmem>>, vector<8x1xf32>,
    return
  }
  func.func @transform_0(%arg0: i32) -> (i32, i32) {
    %c0_i32 = arith.constant 0 : i32
    %c0_i32_0 = arith.constant 0 : i32
    return %arg0, %c0_i32 : i32, i32
  }
  func.func @transform_1(%arg0: i32) -> (i32, i32) {
    %c0_i32 = arith.constant 0 : i32
    %c0_i32_0 = arith.constant 0 : i32
    return %arg0, %c0_i32 : i32, i32
  }
  func.func @transform_2(%arg0: i32) -> (i32, i32) {
    %c0_i32 = arith.constant 0 : i32
    %c0_i32_0 = arith.constant 0 : i32
    %c0_i32_1 = arith.constant 0 : i32
    return %c0_i32, %c0_i32_0 : i32, i32
  }
  func.func @transform_3(%arg0: i32) -> (i32, i32) {
    %c0_i32 = arith.constant 0 : i32
    %c0_i32_0 = arith.constant 0 : i32
    %c0_i32_1 = arith.constant 0 : i32
    return %c0_i32, %c0_i32_0 : i32, i32
  }
  func.func @transform_4(%arg0: i32) -> (i32, i32) {
    %c0_i32 = arith.constant 0 : i32
    %c0_i32_0 = arith.constant 0 : i32
    %c0_i32_1 = arith.constant 0 : i32
    return %c0_i32, %c0_i32_0 : i32, i32
  }
  func.func @transform_5(%arg0: i32) -> (i32, i32) {
    %c0_i32 = arith.constant 0 : i32
    %c0_i32_0 = arith.constant 0 : i32
    %c0_i32_1 = arith.constant 0 : i32
    return %c0_i32, %c0_i32_0 : i32, i32
  }
  func.func @transform_6(%arg0: i32) -> (i32, i32) {
    %c0_i32 = arith.constant 0 : i32
    %c0_i32_0 = arith.constant 0 : i32
    %c0_i32_1 = arith.constant 0 : i32
    return %c0_i32, %c0_i32_0 : i32, i32
  }
  func.func @transform_7(%arg0: i32) -> (i32, i32) {
    %c0_i32 = arith.constant 0 : i32
    %c0_i32_0 = arith.constant 0 : i32
    %c0_i32_1 = arith.constant 0 : i32
    return %c0_i32, %c0_i32_0 : i32, i32
  }
  func.func @transform_8(%arg0: i32) -> (i32, i32) {
    %c0_i32 = arith.constant 0 : i32
    %c0_i32_0 = arith.constant 0 : i32
    return %arg0, %c0_i32 : i32, i32
  }
}

</mosaic_0001>

<llo_original>
// kernel: _lambda_.1
$region0: #{_lambda_.1}
  #allocation0 [shape = 'u32[]', space=smem, size = 0x4, offset = 0x4, fixed_abs, tag = 'smem constant byte address 0x4 - core index']
  #allocation1 [shape = 'u32[144,128]{1,0:T(1,128)}', space=vmem, size = 0x12000, scoped, tag = 'internal scratch']
  #allocation2 [shape = 'f32[1,1]{1,0:T(1,128)S(1)}', space=vmem, size = 0x200, scoped, tag = 'scoped memory for _lambda_.1']
  %s0 = inlined_call_operand.vmem [shape: f32[8,32], index: 0, kind: input, shape index: {}]
  %s1 = inlined_call_operand.vmem [shape: f32[8,32], index: 1, kind: input, shape index: {}]
  %s2 = inlined_call_operand.vmem [shape: bf16[64,1024], index: 2, kind: input, shape index: {}]
  %s3 = inlined_call_operand.vmem [shape: f32[1,1024], index: 3, kind: input, shape index: {}]
  %s4 = inlined_call_operand.vmem [shape: bf16[1024,512], index: 4, kind: input, shape index: {}]
  %s5 = inlined_call_operand.vmem [shape: f32[1,512], index: 5, kind: input, shape index: {}]
  %s6 = inlined_call_operand.vmem [shape: f32[1,512], index: 6, kind: input, shape index: {}]
  %s7 = inlined_call_operand.<no memory space> [shape: f32[1,1], index: 7, kind: input, shape index: {}]
  %s8 = inlined_call_operand.vmem [shape: f32[8,1], index: 8, kind: output, shape index: {}]
  %s9 = sld [smem:[#allocation0]]
  $region42: #{_lambda_.1} parent=0
    _
  %s11 = ssub.s32 1, %s9
  %s12 = scalar_select 0, %s11, %s9
  %v13 = vstv %s7
  %14 = vst [vmem:[#allocation2] sm:$0x1] %v13
  // Predicated region
  $region2: #{_lambda_.1} parent=0 // pred_check
    _
  $region3: #{_lambda_.1} parent=0 // pred_check_branch
    %16 = sbr.rel (0) target = $region5
  $region4: #{_lambda_.1} parent=0 // pred_region
    _
  $region5: #{_lambda_.1} parent=0 // pred_fallthru
    _
  // Predicated region
  $region6: #{_lambda_.1} parent=0 // pred_check
    _
  $region7: #{_lambda_.1} parent=0 // pred_check_branch
    %18 = sbr.rel (0) target = $region9
  $region8: #{_lambda_.1} parent=0 // pred_region
    _
  $region9: #{_lambda_.1} parent=0 // pred_fallthru
    _
  // Predicated region
  $region10: #{_lambda_.1} parent=0 // pred_check
    _
  $region11: #{_lambda_.1} parent=0 // pred_check_branch
    %20 = sbr.rel (0) target = $region13
  $region12: #{_lambda_.1} parent=0 // pred_region
    _
  $region13: #{_lambda_.1} parent=0 // pred_fallthru
    _
  // Predicated region
  $region14: #{_lambda_.1} parent=0 // pred_check
    _
  $region15: #{_lambda_.1} parent=0 // pred_check_branch
    %22 = sbr.rel (0) target = $region17
  $region16: #{_lambda_.1} parent=0 // pred_region
    _
  $region17: #{_lambda_.1} parent=0 // pred_fallthru
    _
  // Predicated region
  $region18: #{_lambda_.1} parent=0 // pred_check
    _
  $region19: #{_lambda_.1} parent=0 // pred_check_branch
    %24 = sbr.rel (0) target = $region21
  $region20: #{_lambda_.1} parent=0 // pred_region
    _
  $region21: #{_lambda_.1} parent=0 // pred_fallthru
    _
  // Predicated region
  $region22: #{_lambda_.1} parent=0 // pred_check
    _
  $region23: #{_lambda_.1} parent=0 // pred_check_branch
    %26 = sbr.rel (0) target = $region25
  $region24: #{_lambda_.1} parent=0 // pred_region
    _
  $region25: #{_lambda_.1} parent=0 // pred_fallthru
    _
  // Predicated region
  $region26: #{_lambda_.1} parent=0 // pred_check
    _
  $region27: #{_lambda_.1} parent=0 // pred_check_branch
    %28 = sbr.rel (0) target = $region29
  $region28: #{_lambda_.1} parent=0 // pred_region
    _
  $region29: #{_lambda_.1} parent=0 // pred_fallthru
    _
  // Predicated region
  $region30: #{_lambda_.1} parent=0 // pred_check
    _
  $region31: #{_lambda_.1} parent=0 // pred_check_branch
    %30 = sbr.rel (0) target = $region33
  $region32: #{_lambda_.1} parent=0 // pred_region
    _
  $region33: #{_lambda_.1} parent=0 // pred_fallthru
    _
  %v32 = vld [vmem:[%s0] sm:$0xff]
  %v33 = vld [vmem:[%s1] sm:$0xff]
  %35 = vrot.lane.b32.xlu0 %v33, 32
  %v36 = vpop.permute.xlu0 %35
  %vm38 = vcmask 261120
  %v39 = vsel %vm38, %v32, %v36
  %v40 = vpack.c.bf16 %v39, %v39
  %v41 = vld [vmem:[%s2] sm:$0xff]
  %v42 = vld [vmem:[%s2 + $0x8] sm:$0xff]
  %v43 = vld [vmem:[%s2 + $0x10] sm:$0xff]
  %v44 = vld [vmem:[%s2 + $0x18] sm:$0xff]
  %v45 = vld [vmem:[%s2 + $0x20] sm:$0xff]
  %v46 = vld [vmem:[%s2 + $0x28] sm:$0xff]
  %v47 = vld [vmem:[%s2 + $0x30] sm:$0xff]
  %v48 = vld [vmem:[%s2 + $0x38] sm:$0xff]
  %v49 = vld [vmem:[%s2 + $0x40] sm:$0xff]
  %v50 = vld [vmem:[%s2 + $0x48] sm:$0xff]
  %v51 = vld [vmem:[%s2 + $0x50] sm:$0xff]
  %v52 = vld [vmem:[%s2 + $0x58] sm:$0xff]
  %v53 = vld [vmem:[%s2 + $0x60] sm:$0xff]
  %v54 = vld [vmem:[%s2 + $0x68] sm:$0xff]
  %v55 = vld [vmem:[%s2 + $0x70] sm:$0xff]
  %v56 = vld [vmem:[%s2 + $0x78] sm:$0xff]
  %v57 = vld [vmem:[%s2 + $0x80] sm:$0xff]
  %v58 = vld [vmem:[%s2 + $0x88] sm:$0xff]
  %v59 = vld [vmem:[%s2 + $0x90] sm:$0xff]
  %v60 = vld [vmem:[%s2 + $0x98] sm:$0xff]
  %v61 = vld [vmem:[%s2 + $0xa0] sm:$0xff]
  %v62 = vld [vmem:[%s2 + $0xa8] sm:$0xff]
  %v63 = vld [vmem:[%s2 + $0xb0] sm:$0xff]
  %v64 = vld [vmem:[%s2 + $0xb8] sm:$0xff]
  %v65 = vld [vmem:[%s2 + $0xc0] sm:$0xff]
  %v66 = vld [vmem:[%s2 + $0xc8] sm:$0xff]
  %v67 = vld [vmem:[%s2 + $0xd0] sm:$0xff]
  %v68 = vld [vmem:[%s2 + $0xd8] sm:$0xff]
  %v69 = vld [vmem:[%s2 + $0xe0] sm:$0xff]
  %v70 = vld [vmem:[%s2 + $0xe8] sm:$0xff]
  %v71 = vld [vmem:[%s2 + $0xf0] sm:$0xff]
  %v72 = vld [vmem:[%s2 + $0xf8] sm:$0xff]
  %v73 = vld [vmem:[%s3] sm:$0xff]
  %v75 = vlaneseq
  %v76 = vshrl.u32 %v75, 7
  %v77 = vsub.s32 0, %v76
  %v78 = vrot.slane %v73, %v77
  %v79 = vlaneseq
  %v80 = vshrl.u32 %v79, 7
  %v81 = vsub.s32 1, %v80
  %v82 = vrot.slane %v73, %v81
  %v83 = vlaneseq
  %v84 = vshrl.u32 %v83, 7
  %v85 = vsub.s32 2, %v84
  %v86 = vrot.slane %v73, %v85
  %v87 = vlaneseq
  %v88 = vshrl.u32 %v87, 7
  %v89 = vsub.s32 3, %v88
  %v90 = vrot.slane %v73, %v89
  %v91 = vlaneseq
  %v92 = vshrl.u32 %v91, 7
  %v93 = vsub.s32 4, %v92
  %v94 = vrot.slane %v73, %v93
  %v95 = vlaneseq
  %v96 = vshrl.u32 %v95, 7
  %v97 = vsub.s32 5, %v96
  %v98 = vrot.slane %v73, %v97
  %v99 = vlaneseq
  %v100 = vshrl.u32 %v99, 7
  %v101 = vsub.s32 6, %v100
  %v102 = vrot.slane %v73, %v101
  %v103 = vlaneseq
  %v104 = vshrl.u32 %v103, 7
  %v105 = vsub.s32 7, %v104
  %v106 = vrot.slane %v73, %v105
  %v147 = vunpack.c.l.b16 %v41
  %v148 = vunpack.c.h.b16 %v41
  %v149 = vunpack.c.l.b16 %v42
  %v150 = vunpack.c.h.b16 %v42
  %v151 = vunpack.c.l.b16 %v43
  %v152 = vunpack.c.h.b16 %v43
  %v153 = vunpack.c.l.b16 %v44
  %v154 = vunpack.c.h.b16 %v44
  %v155 = vunpack.c.l.b16 %v45
  %v156 = vunpack.c.h.b16 %v45
  %v157 = vunpack.c.l.b16 %v46
  %v158 = vunpack.c.h.b16 %v46
  %v159 = vunpack.c.l.b16 %v47
  %v160 = vunpack.c.h.b16 %v47
  %v161 = vunpack.c.l.b16 %v48
  %v162 = vunpack.c.h.b16 %v48
  %v163 = vunpack.c.l.b16 %v49
  %v164 = vunpack.c.h.b16 %v49
  %v165 = vunpack.c.l.b16 %v50
  %v166 = vunpack.c.h.b16 %v50
  %v167 = vunpack.c.l.b16 %v51
  %v168 = vunpack.c.h.b16 %v51
  %v169 = vunpack.c.l.b16 %v52
  %v170 = vunpack.c.h.b16 %v52
  %v171 = vunpack.c.l.b16 %v53
  %v172 = vunpack.c.h.b16 %v53
  %v173 = vunpack.c.l.b16 %v54
  %v174 = vunpack.c.h.b16 %v54
  %v175 = vunpack.c.l.b16 %v55
  %v176 = vunpack.c.h.b16 %v55
  %v177 = vunpack.c.l.b16 %v56
  %v178 = vunpack.c.h.b16 %v56
  %v179 = vunpack.c.l.b16 %v57
  %v180 = vunpack.c.h.b16 %v57
  %v181 = vunpack.c.l.b16 %v58
  %v182 = vunpack.c.h.b16 %v58
  %v183 = vunpack.c.l.b16 %v59
  %v184 = vunpack.c.h.b16 %v59
  %v185 = vunpack.c.l.b16 %v60
  %v186 = vunpack.c.h.b16 %v60
  %v187 = vunpack.c.l.b16 %v61
  %v188 = vunpack.c.h.b16 %v61
  %v189 = vunpack.c.l.b16 %v62
  %v190 = vunpack.c.h.b16 %v62
  %v191 = vunpack.c.l.b16 %v63
  %v192 = vunpack.c.h.b16 %v63
  %v193 = vunpack.c.l.b16 %v64
  %v194 = vunpack.c.h.b16 %v64
  %v195 = vunpack.c.l.b16 %v65
  %v196 = vunpack.c.h.b16 %v65
  %v197 = vunpack.c.l.b16 %v66
  %v198 = vunpack.c.h.b16 %v66
  %v199 = vunpack.c.l.b16 %v67
  %v200 = vunpack.c.h.b16 %v67
  %v201 = vunpack.c.l.b16 %v68
  %v202 = vunpack.c.h.b16 %v68
  %v203 = vunpack.c.l.b16 %v69
  %v204 = vunpack.c.h.b16 %v69
  %v205 = vunpack.c.l.b16 %v70
  %v206 = vunpack.c.h.b16 %v70
  %v207 = vunpack.c.l.b16 %v71
  %v208 = vunpack.c.h.b16 %v71
  %v209 = vunpack.c.l.b16 %v72
  %v210 = vunpack.c.h.b16 %v72
  %v211 = vpack.c.b16 %v155, %v147
  %v212 = vpack.c.b16 %v156, %v148
  %v213 = vpack.c.b16 %v157, %v149
  %v214 = vpack.c.b16 %v158, %v150
  %v215 = vpack.c.b16 %v159, %v151
  %v216 = vpack.c.b16 %v160, %v152
  %v217 = vpack.c.b16 %v161, %v153
  %v218 = vpack.c.b16 %v162, %v154
  %v219 = vpack.c.b16 %v171, %v163
  %v220 = vpack.c.b16 %v172, %v164
  %v221 = vpack.c.b16 %v173, %v165
  %v222 = vpack.c.b16 %v174, %v166
  %v223 = vpack.c.b16 %v175, %v167
  %v224 = vpack.c.b16 %v176, %v168
  %v225 = vpack.c.b16 %v177, %v169
  %v226 = vpack.c.b16 %v178, %v170
  %v227 = vpack.c.b16 %v187, %v179
  %v228 = vpack.c.b16 %v188, %v180
  %v229 = vpack.c.b16 %v189, %v181
  %v230 = vpack.c.b16 %v190, %v182
  %v231 = vpack.c.b16 %v191, %v183
  %v232 = vpack.c.b16 %v192, %v184
  %v233 = vpack.c.b16 %v193, %v185
  %v234 = vpack.c.b16 %v194, %v186
  %v235 = vpack.c.b16 %v203, %v195
  %v236 = vpack.c.b16 %v204, %v196
  %v237 = vpack.c.b16 %v205, %v197
  %v238 = vpack.c.b16 %v206, %v198
  %v239 = vpack.c.b16 %v207, %v199
  %v240 = vpack.c.b16 %v208, %v200
  %v241 = vpack.c.b16 %v209, %v201
  %v242 = vpack.c.b16 %v210, %v202
  %vm275 = vcmask 523264
  %v277 = vsel %vm275, %v40, 0
  %279 = vmatprep.subr.bf16.mxu0 %v212
  %280 = vmatpush1.bf16.msra.mxu0 %v211
  %281 = vmatprep.subr.bf16.mxu0 %v220
  %282 = vmatpush1.bf16.msra.mxu0 %v219
  %283 = vmatprep.subr.bf16.mxu0 %v228
  %284 = vmatpush1.bf16.msra.mxu0 %v227
  %285 = vmatprep.subr.bf16.mxu0 %v236
  %286 = vmatpush1.bf16.msra.mxu0 %v235
  %287 = vmatprep.subr.bf16.mxu0 0
  %288 = vmatpush1.bf16.msra.mxu0 0
  %289 = vmatprep.subr.bf16.mxu0 0
  %290 = vmatpush1.bf16.msra.mxu0 0
  %291 = vmatprep.subr.bf16.mxu0 0
  %292 = vmatpush1.bf16.msra.mxu0 0
  %293 = vmatprep.subr.bf16.mxu0 0
  %294 = vmatpush1.bf16.msra.mxu0 0
  %295 = vmatprep.subr.bf16.mxu0 0
  %296 = vmatpush1.bf16.msra.mxu0 0
  %297 = vmatprep.subr.bf16.mxu0 0
  %298 = vmatpush1.bf16.msra.mxu0 0
  %299 = vmatprep.subr.bf16.mxu0 0
  %300 = vmatpush1.bf16.msra.mxu0 0
  %301 = vmatprep.subr.bf16.mxu0 0
  %302 = vmatpush1.bf16.msra.mxu0 0
  %303 = vmatprep.subr.bf16.mxu0 0
  %304 = vmatpush1.bf16.msra.mxu0 0
  %305 = vmatprep.subr.bf16.mxu0 0
  %306 = vmatpush1.bf16.msra.mxu0 0
  %307 = vmatprep.subr.bf16.mxu0 0
  %308 = vmatpush1.bf16.msra.mxu0 0
  %309 = vmatprep.subr.bf16.mxu0 0
  %310 = vmatpush1.bf16.msra.mxu0 0
  %311 = vmatprep.mubr.bf16.mxu0 0
  %312 = vmatmul.mubr.bf16.gmra.mrb[0].mxu0 %v277
  %v313 = vpop.f32.mrb[0].mxu0
  %v314 = vadd.f32 %v78, %v313
  %v315 = vpop.f32.mrb[0].mxu0
  %v316 = vadd.f32 %v82, %v315
  %v317 = vpop.f32.mrb[0].mxu0
  %v318 = vpop.f32.mrb[0].mxu0
  %319 = vdwg.mxu0
  %320 = vmatprep.subr.bf16.mxu0 %v214
  %321 = vmatpush1.bf16.msra.mxu0 %v213
  %322 = vmatprep.subr.bf16.mxu0 %v222
  %323 = vmatpush1.bf16.msra.mxu0 %v221
  %324 = vmatprep.subr.bf16.mxu0 %v230
  %325 = vmatpush1.bf16.msra.mxu0 %v229
  %326 = vmatprep.subr.bf16.mxu0 %v238
  %327 = vmatpush1.bf16.msra.mxu0 %v237
  %328 = vmatprep.subr.bf16.mxu0 0
  %329 = vmatpush1.bf16.msra.mxu0 0
  %330 = vmatprep.subr.bf16.mxu0 0
  %331 = vmatpush1.bf16.msra.mxu0 0
  %332 = vmatprep.subr.bf16.mxu0 0
  %333 = vmatpush1.bf16.msra.mxu0 0
  %334 = vmatprep.subr.bf16.mxu0 0
  %335 = vmatpush1.bf16.msra.mxu0 0
  %336 = vmatprep.subr.bf16.mxu0 0
  %337 = vmatpush1.bf16.msra.mxu0 0
  %338 = vmatprep.subr.bf16.mxu0 0
  %339 = vmatpush1.bf16.msra.mxu0 0
  %340 = vmatprep.subr.bf16.mxu0 0
  %341 = vmatpush1.bf16.msra.mxu0 0
  %342 = vmatprep.subr.bf16.mxu0 0
  %343 = vmatpush1.bf16.msra.mxu0 0
  %344 = vmatprep.subr.bf16.mxu0 0
  %345 = vmatpush1.bf16.msra.mxu0 0
  %346 = vmatprep.subr.bf16.mxu0 0
  %347 = vmatpush1.bf16.msra.mxu0 0
  %348 = vmatprep.subr.bf16.mxu0 0
  %349 = vmatpush1.bf16.msra.mxu0 0
  %350 = vmatprep.subr.bf16.mxu0 0
  %351 = vmatpush1.bf16.msra.mxu0 0
  %352 = vmatprep.mubr.bf16.mxu0 0
  %353 = vmatmul.mubr.bf16.gmra.mrb[0].mxu0 %v277
  %v354 = vpop.f32.mrb[0].mxu0
  %v355 = vadd.f32 %v86, %v354
  %v356 = vpop.f32.mrb[0].mxu0
  %v357 = vadd.f32 %v90, %v356
  %v358 = vpop.f32.mrb[0].mxu0
  %v359 = vpop.f32.mrb[0].mxu0
  %360 = vdwg.mxu0
  %361 = vmatprep.subr.bf16.mxu0 %v216
  %362 = vmatpush1.bf16.msra.mxu0 %v215
  %363 = vmatprep.subr.bf16.mxu0 %v224
  %364 = vmatpush1.bf16.msra.mxu0 %v223
  %365 = vmatprep.subr.bf16.mxu0 %v232
  %366 = vmatpush1.bf16.msra.mxu0 %v231
  %367 = vmatprep.subr.bf16.mxu0 %v240
  %368 = vmatpush1.bf16.msra.mxu0 %v239
  %369 = vmatprep.subr.bf16.mxu0 0
  %370 = vmatpush1.bf16.msra.mxu0 0
  %371 = vmatprep.subr.bf16.mxu0 0
  %372 = vmatpush1.bf16.msra.mxu0 0
  %373 = vmatprep.subr.bf16.mxu0 0
  %374 = vmatpush1.bf16.msra.mxu0 0
  %375 = vmatprep.subr.bf16.mxu0 0
  %376 = vmatpush1.bf16.msra.mxu0 0
  %377 = vmatprep.subr.bf16.mxu0 0
  %378 = vmatpush1.bf16.msra.mxu0 0
  %379 = vmatprep.subr.bf16.mxu0 0
  %380 = vmatpush1.bf16.msra.mxu0 0
  %381 = vmatprep.subr.bf16.mxu0 0
  %382 = vmatpush1.bf16.msra.mxu0 0
  %383 = vmatprep.subr.bf16.mxu0 0
  %384 = vmatpush1.bf16.msra.mxu0 0
  %385 = vmatprep.subr.bf16.mxu0 0
  %386 = vmatpush1.bf16.msra.mxu0 0
  %387 = vmatprep.subr.bf16.mxu0 0
  %388 = vmatpush1.bf16.msra.mxu0 0
  %389 = vmatprep.subr.bf16.mxu0 0
  %390 = vmatpush1.bf16.msra.mxu0 0
  %391 = vmatprep.subr.bf16.mxu0 0
  %392 = vmatpush1.bf16.msra.mxu0 0
  %393 = vmatprep.mubr.bf16.mxu0 0
  %394 = vmatmul.mubr.bf16.gmra.mrb[0].mxu0 %v277
  %v395 = vpop.f32.mrb[0].mxu0
  %v396 = vadd.f32 %v94, %v395
  %v397 = vpop.f32.mrb[0].mxu0
  %v398 = vadd.f32 %v98, %v397
  %v399 = vpop.f32.mrb[0].mxu0
  %v400 = vpop.f32.mrb[0].mxu0
  %401 = vdwg.mxu0
  %402 = vmatprep.subr.bf16.mxu0 %v218
  %403 = vmatpush1.bf16.msra.mxu0 %v217
  %404 = vmatprep.subr.bf16.mxu0 %v226
  %405 = vmatpush1.bf16.msra.mxu0 %v225
  %406 = vmatprep.subr.bf16.mxu0 %v234
  %407 = vmatpush1.bf16.msra.mxu0 %v233
  %408 = vmatprep.subr.bf16.mxu0 %v242
  %409 = vmatpush1.bf16.msra.mxu0 %v241
  %410 = vmatprep.subr.bf16.mxu0 0
  %411 = vmatpush1.bf16.msra.mxu0 0
  %412 = vmatprep.subr.bf16.mxu0 0
  %413 = vmatpush1.bf16.msra.mxu0 0
  %414 = vmatprep.subr.bf16.mxu0 0
  %415 = vmatpush1.bf16.msra.mxu0 0
  %416 = vmatprep.subr.bf16.mxu0 0
  %417 = vmatpush1.bf16.msra.mxu0 0
  %418 = vmatprep.subr.bf16.mxu0 0
  %419 = vmatpush1.bf16.msra.mxu0 0
  %420 = vmatprep.subr.bf16.mxu0 0
  %421 = vmatpush1.bf16.msra.mxu0 0
  %422 = vmatprep.subr.bf16.mxu0 0
  %423 = vmatpush1.bf16.msra.mxu0 0
  %424 = vmatprep.subr.bf16.mxu0 0
  %425 = vmatpush1.bf16.msra.mxu0 0
  %426 = vmatprep.subr.bf16.mxu0 0
  %427 = vmatpush1.bf16.msra.mxu0 0
  %428 = vmatprep.subr.bf16.mxu0 0
  %429 = vmatpush1.bf16.msra.mxu0 0
  %430 = vmatprep.subr.bf16.mxu0 0
  %431 = vmatpush1.bf16.msra.mxu0 0
  %432 = vmatprep.subr.bf16.mxu0 0
  %433 = vmatpush1.bf16.msra.mxu0 0
  %434 = vmatprep.mubr.bf16.mxu0 0
  %435 = vmatmul.mubr.bf16.gmra.mrb[0].mxu0 %v277
  %v436 = vpop.f32.mrb[0].mxu0
  %v437 = vadd.f32 %v102, %v436
  %v438 = vpop.f32.mrb[0].mxu0
  %v439 = vadd.f32 %v106, %v438
  %v440 = vpop.f32.mrb[0].mxu0
  %v441 = vpop.f32.mrb[0].mxu0
  %442 = vdwg.mxu0
  %v443 = vxor.u32 %v314, 2147483648
  %v444 = vxor.u32 %v316, 2147483648
  %v445 = vxor.u32 %v355, 2147483648
  %v446 = vxor.u32 %v357, 2147483648
  %v447 = vxor.u32 %v396, 2147483648
  %v448 = vxor.u32 %v398, 2147483648
  %v449 = vxor.u32 %v437, 2147483648
  %v450 = vxor.u32 %v439, 2147483648
  %v451 = vmul.f32 %v443, 1.442695
  %v452 = vpow.pop %v451
  %v453 = vmul.f32 %v444, 1.442695
  %v454 = vpow.pop %v453
  %v455 = vmul.f32 %v445, 1.442695
  %v456 = vpow.pop %v455
  %v457 = vmul.f32 %v446, 1.442695
  %v458 = vpow.pop %v457
  %v459 = vmul.f32 %v447, 1.442695
  %v460 = vpow.pop %v459
  %v461 = vmul.f32 %v448, 1.442695
  %v462 = vpow.pop %v461
  %v463 = vmul.f32 %v449, 1.442695
  %v464 = vpow.pop %v463
  %v465 = vmul.f32 %v450, 1.442695
  %v466 = vpow.pop %v465
  %v467 = vadd.f32 %v452, 1.0
  %v468 = vadd.f32 %v454, 1.0
  %v469 = vadd.f32 %v456, 1.0
  %v470 = vadd.f32 %v458, 1.0
  %v471 = vadd.f32 %v460, 1.0
  %v472 = vadd.f32 %v462, 1.0
  %v473 = vadd.f32 %v464, 1.0
  %v474 = vadd.f32 %v466, 1.0
  %v475 = vrcp.pop %v467
  %v476 = vmul.f32 1.0, %v475
  %v477 = vrcp.pop %v468
  %v478 = vmul.f32 1.0, %v477
  %v479 = vrcp.pop %v469
  %v480 = vmul.f32 1.0, %v479
  %v481 = vrcp.pop %v470
  %v482 = vmul.f32 1.0, %v481
  %v483 = vrcp.pop %v471
  %v484 = vmul.f32 1.0, %v483
  %v485 = vrcp.pop %v472
  %v486 = vmul.f32 1.0, %v485
  %v487 = vrcp.pop %v473
  %v488 = vmul.f32 1.0, %v487
  %v489 = vrcp.pop %v474
  %v490 = vmul.f32 1.0, %v489
  %v491 = vmul.f32 %v314, %v476
  %v492 = vmul.f32 %v316, %v478
  %v493 = vmul.f32 %v355, %v480
  %v494 = vmul.f32 %v357, %v482
  %v495 = vmul.f32 %v396, %v484
  %v496 = vmul.f32 %v398, %v486
  %v497 = vmul.f32 %v437, %v488
  %v498 = vmul.f32 %v439, %v490
  %v499 = vpack.c.bf16 %v491, %v491
  %v500 = vpack.c.bf16 %v492, %v492
  %v501 = vpack.c.bf16 %v493, %v493
  %v502 = vpack.c.bf16 %v494, %v494
  %v503 = vpack.c.bf16 %v495, %v495
  %v504 = vpack.c.bf16 %v496, %v496
  %v505 = vpack.c.bf16 %v497, %v497
  %v506 = vpack.c.bf16 %v498, %v498
  %v507 = vld [vmem:[%s4] sm:$0xff]
  %v508 = vld [vmem:[%s4 + $0x8] sm:$0xff]
  %v509 = vld [vmem:[%s4 + $0x10] sm:$0xff]
  %v510 = vld [vmem:[%s4 + $0x18] sm:$0xff]
  %v511 = vld [vmem:[%s4 + $0x20] sm:$0xff]
  %v512 = vld [vmem:[%s4 + $0x28] sm:$0xff]
  %v513 = vld [vmem:[%s4 + $0x30] sm:$0xff]
  %v514 = vld [vmem:[%s4 + $0x38] sm:$0xff]
  %v515 = vld [vmem:[%s4 + $0x40] sm:$0xff]
  %v516 = vld [vmem:[%s4 + $0x48] sm:$0xff]
  %v517 = vld [vmem:[%s4 + $0x50] sm:$0xff]
  %v518 = vld [vmem:[%s4 + $0x58] sm:$0xff]
  %v519 = vld [vmem:[%s4 + $0x60] sm:$0xff]
  %v520 = vld [vmem:[%s4 + $0x68] sm:$0xff]
  %v521 = vld [vmem:[%s4 + $0x70] sm:$0xff]
  %v522 = vld [vmem:[%s4 + $0x78] sm:$0xff]
  %v523 = vld [vmem:[%s4 + $0x80] sm:$0xff]
  %v524 = vld [vmem:[%s4 + $0x88] sm:$0xff]
  %v525 = vld [vmem:[%s4 + $0x90] sm:$0xff]
  %v526 = vld [vmem:[%s4 + $0x98] sm:$0xff]
  %v527 = vld [vmem:[%s4 + $0xa0] sm:$0xff]
  %v528 = vld [vmem:[%s4 + $0xa8] sm:$0xff]
  %v529 = vld [vmem:[%s4 + $0xb0] sm:$0xff]
  %v530 = vld [vmem:[%s4 + $0xb8] sm:$0xff]
  %v531 = vld [vmem:[%s4 + $0xc0] sm:$0xff]
  %v532 = vld [vmem:[%s4 + $0xc8] sm:$0xff]
  %v533 = vld [vmem:[%s4 + $0xd0] sm:$0xff]
  %v534 = vld [vmem:[%s4 + $0xd8] sm:$0xff]
  %v535 = vld [vmem:[%s4 + $0xe0] sm:$0xff]
  %v536 = vld [vmem:[%s4 + $0xe8] sm:$0xff]
  %v537 = vld [vmem:[%s4 + $0xf0] sm:$0xff]
  %v538 = vld [vmem:[%s4 + $0xf8] sm:$0xff]
  %v539 = vld [vmem:[%s4 + $0x100] sm:$0xff]
  %v540 = vld [vmem:[%s4 + $0x108] sm:$0xff]
  %v541 = vld [vmem:[%s4 + $0x110] sm:$0xff]
  %v542 = vld [vmem:[%s4 + $0x118] sm:$0xff]
  %v543 = vld [vmem:[%s4 + $0x120] sm:$0xff]
  %v544 = vld [vmem:[%s4 + $0x128] sm:$0xff]
  %v545 = vld [vmem:[%s4 + $0x130] sm:$0xff]
  %v546 = vld [vmem:[%s4 + $0x138] sm:$0xff]
  %v547 = vld [vmem:[%s4 + $0x140] sm:$0xff]
  %v548 = vld [vmem:[%s4 + $0x148] sm:$0xff]
  %v549 = vld [vmem:[%s4 + $0x150] sm:$0xff]
  %v550 = vld [vmem:[%s4 + $0x158] sm:$0xff]
  %v551 = vld [vmem:[%s4 + $0x160] sm:$0xff]
  %v552 = vld [vmem:[%s4 + $0x168] sm:$0xff]
  %v553 = vld [vmem:[%s4 + $0x170] sm:$0xff]
  %v554 = vld [vmem:[%s4 + $0x178] sm:$0xff]
  %v555 = vld [vmem:[%s4 + $0x180] sm:$0xff]
  %v556 = vld [vmem:[%s4 + $0x188] sm:$0xff]
  %v557 = vld [vmem:[%s4 + $0x190] sm:$0xff]
  %v558 = vld [vmem:[%s4 + $0x198] sm:$0xff]
  %v559 = vld [vmem:[%s4 + $0x1a0] sm:$0xff]
  %v560 = vld [vmem:[%s4 + $0x1a8] sm:$0xff]
  %v561 = vld [vmem:[%s4 + $0x1b0] sm:$0xff]
  %v562 = vld [vmem:[%s4 + $0x1b8] sm:$0xff]
  %v563 = vld [vmem:[%s4 + $0x1c0] sm:$0xff]
  %v564 = vld [vmem:[%s4 + $0x1c8] sm:$0xff]
  %v565 = vld [vmem:[%s4 + $0x1d0] sm:$0xff]
  %v566 = vld [vmem:[%s4 + $0x1d8] sm:$0xff]
  %v567 = vld [vmem:[%s4 + $0x1e0] sm:$0xff]
  %v568 = vld [vmem:[%s4 + $0x1e8] sm:$0xff]
  %v569 = vld [vmem:[%s4 + $0x1f0] sm:$0xff]
  %v570 = vld [vmem:[%s4 + $0x1f8] sm:$0xff]
  %v571 = vld [vmem:[%s4 + $0x200] sm:$0xff]
  %v572 = vld [vmem:[%s4 + $0x208] sm:$0xff]
  %v573 = vld [vmem:[%s4 + $0x210] sm:$0xff]
  %v574 = vld [vmem:[%s4 + $0x218] sm:$0xff]
  %v575 = vld [vmem:[%s4 + $0x220] sm:$0xff]
  %v576 = vld [vmem:[%s4 + $0x228] sm:$0xff]
  %v577 = vld [vmem:[%s4 + $0x230] sm:$0xff]
  %v578 = vld [vmem:[%s4 + $0x238] sm:$0xff]
  %v579 = vld [vmem:[%s4 + $0x240] sm:$0xff]
  %v580 = vld [vmem:[%s4 + $0x248] sm:$0xff]
  %v581 = vld [vmem:[%s4 + $0x250] sm:$0xff]
  %v582 = vld [vmem:[%s4 + $0x258] sm:$0xff]
  %v583 = vld [vmem:[%s4 + $0x260] sm:$0xff]
  %v584 = vld [vmem:[%s4 + $0x268] sm:$0xff]
  %v585 = vld [vmem:[%s4 + $0x270] sm:$0xff]
  %v586 = vld [vmem:[%s4 + $0x278] sm:$0xff]
  %v587 = vld [vmem:[%s4 + $0x280] sm:$0xff]
  %v588 = vld [vmem:[%s4 + $0x288] sm:$0xff]
  %v589 = vld [vmem:[%s4 + $0x290] sm:$0xff]
  %v590 = vld [vmem:[%s4 + $0x298] sm:$0xff]
  %v591 = vld [vmem:[%s4 + $0x2a0] sm:$0xff]
  %v592 = vld [vmem:[%s4 + $0x2a8] sm:$0xff]
  %v593 = vld [vmem:[%s4 + $0x2b0] sm:$0xff]
  %v594 = vld [vmem:[%s4 + $0x2b8] sm:$0xff]
  %v595 = vld [vmem:[%s4 + $0x2c0] sm:$0xff]
  %v596 = vld [vmem:[%s4 + $0x2c8] sm:$0xff]
  %v597 = vld [vmem:[%s4 + $0x2d0] sm:$0xff]
  %v598 = vld [vmem:[%s4 + $0x2d8] sm:$0xff]
  %v599 = vld [vmem:[%s4 + $0x2e0] sm:$0xff]
  %v600 = vld [vmem:[%s4 + $0x2e8] sm:$0xff]
  %v601 = vld [vmem:[%s4 + $0x2f0] sm:$0xff]
  %v602 = vld [vmem:[%s4 + $0x2f8] sm:$0xff]
  %v603 = vld [vmem:[%s4 + $0x300] sm:$0xff]
  %v604 = vld [vmem:[%s4 + $0x308] sm:$0xff]
  %v605 = vld [vmem:[%s4 + $0x310] sm:$0xff]
  %v606 = vld [vmem:[%s4 + $0x318] sm:$0xff]
  %v607 = vld [vmem:[%s4 + $0x320] sm:$0xff]
  %v608 = vld [vmem:[%s4 + $0x328] sm:$0xff]
  %v609 = vld [vmem:[%s4 + $0x330] sm:$0xff]
  %v610 = vld [vmem:[%s4 + $0x338] sm:$0xff]
  %v611 = vld [vmem:[%s4 + $0x340] sm:$0xff]
  %v612 = vld [vmem:[%s4 + $0x348] sm:$0xff]
  %v613 = vld [vmem:[%s4 + $0x350] sm:$0xff]
  %v614 = vld [vmem:[%s4 + $0x358] sm:$0xff]
  %v615 = vld [vmem:[%s4 + $0x360] sm:$0xff]
  %v616 = vld [vmem:[%s4 + $0x368] sm:$0xff]
  %v617 = vld [vmem:[%s4 + $0x370] sm:$0xff]
  %v618 = vld [vmem:[%s4 + $0x378] sm:$0xff]
  %v619 = vld [vmem:[%s4 + $0x380] sm:$0xff]
  %v620 = vld [vmem:[%s4 + $0x388] sm:$0xff]
  %v621 = vld [vmem:[%s4 + $0x390] sm:$0xff]
  %v622 = vld [vmem:[%s4 + $0x398] sm:$0xff]
  %v623 = vld [vmem:[%s4 + $0x3a0] sm:$0xff]
  %v624 = vld [vmem:[%s4 + $0x3a8] sm:$0xff]
  %v625 = vld [vmem:[%s4 + $0x3b0] sm:$0xff]
  %v626 = vld [vmem:[%s4 + $0x3b8] sm:$0xff]
  %v627 = vld [vmem:[%s4 + $0x3c0] sm:$0xff]
  %v628 = vld [vmem:[%s4 + $0x3c8] sm:$0xff]
  %v629 = vld [vmem:[%s4 + $0x3d0] sm:$0xff]
  %v630 = vld [vmem:[%s4 + $0x3d8] sm:$0xff]
  %v631 = vld [vmem:[%s4 + $0x3e0] sm:$0xff]
  %v632 = vld [vmem:[%s4 + $0x3e8] sm:$0xff]
  %v633 = vld [vmem:[%s4 + $0x3f0] sm:$0xff]
  %v634 = vld [vmem:[%s4 + $0x3f8] sm:$0xff]
  %v635 = vld [vmem:[%s4 + $0x400] sm:$0xff]
  %v636 = vld [vmem:[%s4 + $0x408] sm:$0xff]
  %v637 = vld [vmem:[%s4 + $0x410] sm:$0xff]
  %v638 = vld [vmem:[%s4 + $0x418] sm:$0xff]
  %v639 = vld [vmem:[%s4 + $0x420] sm:$0xff]
  %v640 = vld [vmem:[%s4 + $0x428] sm:$0xff]
  %v641 = vld [vmem:[%s4 + $0x430] sm:$0xff]
  %v642 = vld [vmem:[%s4 + $0x438] sm:$0xff]
  %v643 = vld [vmem:[%s4 + $0x440] sm:$0xff]
  %v644 = vld [vmem:[%s4 + $0x448] sm:$0xff]
  %v645 = vld [vmem:[%s4 + $0x450] sm:$0xff]
  %v646 = vld [vmem:[%s4 + $0x458] sm:$0xff]
  %v647 = vld [vmem:[%s4 + $0x460] sm:$0xff]
  %v648 = vld [vmem:[%s4 + $0x468] sm:$0xff]
  %v649 = vld [vmem:[%s4 + $0x470] sm:$0xff]
  %v650 = vld [vmem:[%s4 + $0x478] sm:$0xff]
  %v651 = vld [vmem:[%s4 + $0x480] sm:$0xff]
  %v652 = vld [vmem:[%s4 + $0x488] sm:$0xff]
  %v653 = vld [vmem:[%s4 + $0x490] sm:$0xff]
  %v654 = vld [vmem:[%s4 + $0x498] sm:$0xff]
  %v655 = vld [vmem:[%s4 + $0x4a0] sm:$0xff]
  %v656 = vld [vmem:[%s4 + $0x4a8] sm:$0xff]
  %v657 = vld [vmem:[%s4 + $0x4b0] sm:$0xff]
  %v658 = vld [vmem:[%s4 + $0x4b8] sm:$0xff]
  %v659 = vld [vmem:[%s4 + $0x4c0] sm:$0xff]
  %v660 = vld [vmem:[%s4 + $0x4c8] sm:$0xff]
  %v661 = vld [vmem:[%s4 + $0x4d0] sm:$0xff]
  %v662 = vld [vmem:[%s4 + $0x4d8] sm:$0xff]
  %v663 = vld [vmem:[%s4 + $0x4e0] sm:$0xff]
  %v664 = vld [vmem:[%s4 + $0x4e8] sm:$0xff]
  %v665 = vld [vmem:[%s4 + $0x4f0] sm:$0xff]
  %v666 = vld [vmem:[%s4 + $0x4f8] sm:$0xff]
  %v667 = vld [vmem:[%s4 + $0x500] sm:$0xff]
  %v668 = vld [vmem:[%s4 + $0x508] sm:$0xff]
  %v669 = vld [vmem:[%s4 + $0x510] sm:$0xff]
  %v670 = vld [vmem:[%s4 + $0x518] sm:$0xff]
  %v671 = vld [vmem:[%s4 + $0x520] sm:$0xff]
  %v672 = vld [vmem:[%s4 + $0x528] sm:$0xff]
  %v673 = vld [vmem:[%s4 + $0x530] sm:$0xff]
  %v674 = vld [vmem:[%s4 + $0x538] sm:$0xff]
  %v675 = vld [vmem:[%s4 + $0x540] sm:$0xff]
  %v676 = vld [vmem:[%s4 + $0x548] sm:$0xff]
  %v677 = vld [vmem:[%s4 + $0x550] sm:$0xff]
  %v678 = vld [vmem:[%s4 + $0x558] sm:$0xff]
  %v679 = vld [vmem:[%s4 + $0x560] sm:$0xff]
  %v680 = vld [vmem:[%s4 + $0x568] sm:$0xff]
  %v681 = vld [vmem:[%s4 + $0x570] sm:$0xff]
  %v682 = vld [vmem:[%s4 + $0x578] sm:$0xff]
  %v683 = vld [vmem:[%s4 + $0x580] sm:$0xff]
  %v684 = vld [vmem:[%s4 + $0x588] sm:$0xff]
  %v685 = vld [vmem:[%s4 + $0x590] sm:$0xff]
  %v686 = vld [vmem:[%s4 + $0x598] sm:$0xff]
  %v687 = vld [vmem:[%s4 + $0x5a0] sm:$0xff]
  %v688 = vld [vmem:[%s4 + $0x5a8] sm:$0xff]
  %v689 = vld [vmem:[%s4 + $0x5b0] sm:$0xff]
  %v690 = vld [vmem:[%s4 + $0x5b8] sm:$0xff]
  %v691 = vld [vmem:[%s4 + $0x5c0] sm:$0xff]
  %v692 = vld [vmem:[%s4 + $0x5c8] sm:$0xff]
  %v693 = vld [vmem:[%s4 + $0x5d0] sm:$0xff]
  %v694 = vld [vmem:[%s4 + $0x5d8] sm:$0xff]
  %v695 = vld [vmem:[%s4 + $0x5e0] sm:$0xff]
  %v696 = vld [vmem:[%s4 + $0x5e8] sm:$0xff]
  %v697 = vld [vmem:[%s4 + $0x5f0] sm:$0xff]
  %v698 = vld [vmem:[%s4 + $0x5f8] sm:$0xff]
  %v699 = vld [vmem:[%s4 + $0x600] sm:$0xff]
  %v700 = vld [vmem:[%s4 + $0x608] sm:$0xff]
  %v701 = vld [vmem:[%s4 + $0x610] sm:$0xff]
  %v702 = vld [vmem:[%s4 + $0x618] sm:$0xff]
  %v703 = vld [vmem:[%s4 + $0x620] sm:$0xff]
  %v704 = vld [vmem:[%s4 + $0x628] sm:$0xff]
  %v705 = vld [vmem:[%s4 + $0x630] sm:$0xff]
  %v706 = vld [vmem:[%s4 + $0x638] sm:$0xff]
  %v707 = vld [vmem:[%s4 + $0x640] sm:$0xff]
  %v708 = vld [vmem:[%s4 + $0x648] sm:$0xff]
  %v709 = vld [vmem:[%s4 + $0x650] sm:$0xff]
  %v710 = vld [vmem:[%s4 + $0x658] sm:$0xff]
  %v711 = vld [vmem:[%s4 + $0x660] sm:$0xff]
  %v712 = vld [vmem:[%s4 + $0x668] sm:$0xff]
  %v713 = vld [vmem:[%s4 + $0x670] sm:$0xff]
  %v714 = vld [vmem:[%s4 + $0x678] sm:$0xff]
  %v715 = vld [vmem:[%s4 + $0x680] sm:$0xff]
  %v716 = vld [vmem:[%s4 + $0x688] sm:$0xff]
  %v717 = vld [vmem:[%s4 + $0x690] sm:$0xff]
  %v718 = vld [vmem:[%s4 + $0x698] sm:$0xff]
  %v719 = vld [vmem:[%s4 + $0x6a0] sm:$0xff]
  %v720 = vld [vmem:[%s4 + $0x6a8] sm:$0xff]
  %v721 = vld [vmem:[%s4 + $0x6b0] sm:$0xff]
  %v722 = vld [vmem:[%s4 + $0x6b8] sm:$0xff]
  %v723 = vld [vmem:[%s4 + $0x6c0] sm:$0xff]
  %v724 = vld [vmem:[%s4 + $0x6c8] sm:$0xff]
  %v725 = vld [vmem:[%s4 + $0x6d0] sm:$0xff]
  %v726 = vld [vmem:[%s4 + $0x6d8] sm:$0xff]
  %v727 = vld [vmem:[%s4 + $0x6e0] sm:$0xff]
  %v728 = vld [vmem:[%s4 + $0x6e8] sm:$0xff]
  %v729 = vld [vmem:[%s4 + $0x6f0] sm:$0xff]
  %v730 = vld [vmem:[%s4 + $0x6f8] sm:$0xff]
  %v731 = vld [vmem:[%s4 + $0x700] sm:$0xff]
  %v732 = vld [vmem:[%s4 + $0x708] sm:$0xff]
  %v733 = vld [vmem:[%s4 + $0x710] sm:$0xff]
  %v734 = vld [vmem:[%s4 + $0x718] sm:$0xff]
  %v735 = vld [vmem:[%s4 + $0x720] sm:$0xff]
  %v736 = vld [vmem:[%s4 + $0x728] sm:$0xff]
  %v737 = vld [vmem:[%s4 + $0x730] sm:$0xff]
  %v738 = vld [vmem:[%s4 + $0x738] sm:$0xff]
  %v739 = vld [vmem:[%s4 + $0x740] sm:$0xff]
  %v740 = vld [vmem:[%s4 + $0x748] sm:$0xff]
  %v741 = vld [vmem:[%s4 + $0x750] sm:$0xff]
  %v742 = vld [vmem:[%s4 + $0x758] sm:$0xff]
  %v743 = vld [vmem:[%s4 + $0x760] sm:$0xff]
  %v744 = vld [vmem:[%s4 + $0x768] sm:$0xff]
  %v745 = vld [vmem:[%s4 + $0x770] sm:$0xff]
  %v746 = vld [vmem:[%s4 + $0x778] sm:$0xff]
  %v747 = vld [vmem:[%s4 + $0x780] sm:$0xff]
  %v748 = vld [vmem:[%s4 + $0x788] sm:$0xff]
  %v749 = vld [vmem:[%s4 + $0x790] sm:$0xff]
  %v750 = vld [vmem:[%s4 + $0x798] sm:$0xff]
  %v751 = vld [vmem:[%s4 + $0x7a0] sm:$0xff]
  %v752 = vld [vmem:[%s4 + $0x7a8] sm:$0xff]
  %v753 = vld [vmem:[%s4 + $0x7b0] sm:$0xff]
  %v754 = vld [vmem:[%s4 + $0x7b8] sm:$0xff]
  %v755 = vld [vmem:[%s4 + $0x7c0] sm:$0xff]
  %v756 = vld [vmem:[%s4 + $0x7c8] sm:$0xff]
  %v757 = vld [vmem:[%s4 + $0x7d0] sm:$0xff]
  %v758 = vld [vmem:[%s4 + $0x7d8] sm:$0xff]
  %v759 = vld [vmem:[%s4 + $0x7e0] sm:$0xff]
  %v760 = vld [vmem:[%s4 + $0x7e8] sm:$0xff]
  %v761 = vld [vmem:[%s4 + $0x7f0] sm:$0xff]
  %v762 = vld [vmem:[%s4 + $0x7f8] sm:$0xff]
  %v763 = vld [vmem:[%s5] sm:$0xf]
  %v765 = vlaneseq
  %v766 = vshrl.u32 %v765, 7
  %v767 = vsub.s32 0, %v766
  %v768 = vrot.slane %v763, %v767
  %v769 = vlaneseq
  %v770 = vshrl.u32 %v769, 7
  %v771 = vsub.s32 1, %v770
  %v772 = vrot.slane %v763, %v771
  %v773 = vlaneseq
  %v774 = vshrl.u32 %v773, 7
  %v775 = vsub.s32 2, %v774
  %v776 = vrot.slane %v763, %v775
  %v777 = vlaneseq
  %v778 = vshrl.u32 %v777, 7
  %v779 = vsub.s32 3, %v778
  %v780 = vrot.slane %v763, %v779
  %v1041 = vunpack.c.l.b16 %v507
  %v1042 = vunpack.c.h.b16 %v507
  %v1043 = vunpack.c.l.b16 %v508
  %v1044 = vunpack.c.h.b16 %v508
  %v1045 = vunpack.c.l.b16 %v509
  %v1046 = vunpack.c.h.b16 %v509
  %v1047 = vunpack.c.l.b16 %v510
  %v1048 = vunpack.c.h.b16 %v510
  %v1049 = vunpack.c.l.b16 %v511
  %v1050 = vunpack.c.h.b16 %v511
  %v1051 = vunpack.c.l.b16 %v512
  %v1052 = vunpack.c.h.b16 %v512
  %v1053 = vunpack.c.l.b16 %v513
  %v1054 = vunpack.c.h.b16 %v513
  %v1055 = vunpack.c.l.b16 %v514
  %v1056 = vunpack.c.h.b16 %v514
  %v1057 = vunpack.c.l.b16 %v515
  %v1058 = vunpack.c.h.b16 %v515
  %v1059 = vunpack.c.l.b16 %v516
  %v1060 = vunpack.c.h.b16 %v516
  %v1061 = vunpack.c.l.b16 %v517
  %v1062 = vunpack.c.h.b16 %v517
  %v1063 = vunpack.c.l.b16 %v518
  %v1064 = vunpack.c.h.b16 %v518
  %v1065 = vunpack.c.l.b16 %v519
  %v1066 = vunpack.c.h.b16 %v519
  %v1067 = vunpack.c.l.b16 %v520
  %v1068 = vunpack.c.h.b16 %v520
  %v1069 = vunpack.c.l.b16 %v521
  %v1070 = vunpack.c.h.b16 %v521
  %v1071 = vunpack.c.l.b16 %v522
  %v1072 = vunpack.c.h.b16 %v522
  %v1073 = vunpack.c.l.b16 %v523
  %v1074 = vunpack.c.h.b16 %v523
  %v1075 = vunpack.c.l.b16 %v524
  %v1076 = vunpack.c.h.b16 %v524
  %v1077 = vunpack.c.l.b16 %v525
  %v1078 = vunpack.c.h.b16 %v525
  %v1079 = vunpack.c.l.b16 %v526
  %v1080 = vunpack.c.h.b16 %v526
  %v1081 = vunpack.c.l.b16 %v527
  %v1082 = vunpack.c.h.b16 %v527
  %v1083 = vunpack.c.l.b16 %v528
  %v1084 = vunpack.c.h.b16 %v528
  %v1085 = vunpack.c.l.b16 %v529
  %v1086 = vunpack.c.h.b16 %v529
  %v1087 = vunpack.c.l.b16 %v530
  %v1088 = vunpack.c.h.b16 %v530
  %v1089 = vunpack.c.l.b16 %v531
  %v1090 = vunpack.c.h.b16 %v531
  %v1091 = vunpack.c.l.b16 %v532
  %v1092 = vunpack.c.h.b16 %v532
  %v1093 = vunpack.c.l.b16 %v533
  %v1094 = vunpack.c.h.b16 %v533
  %v1095 = vunpack.c.l.b16 %v534
  %v1096 = vunpack.c.h.b16 %v534
  %v1097 = vunpack.c.l.b16 %v535
  %v1098 = vunpack.c.h.b16 %v535
  %v1099 = vunpack.c.l.b16 %v536
  %v1100 = vunpack.c.h.b16 %v536
  %v1101 = vunpack.c.l.b16 %v537
  %v1102 = vunpack.c.h.b16 %v537
  %v1103 = vunpack.c.l.b16 %v538
  %v1104 = vunpack.c.h.b16 %v538
  %v1105 = vunpack.c.l.b16 %v539
  %v1106 = vunpack.c.h.b16 %v539
  %v1107 = vunpack.c.l.b16 %v540
  %v1108 = vunpack.c.h.b16 %v540
  %v1109 = vunpack.c.l.b16 %v541
  %v1110 = vunpack.c.h.b16 %v541
  %v1111 = vunpack.c.l.b16 %v542
  %v1112 = vunpack.c.h.b16 %v542
  %v1113 = vunpack.c.l.b16 %v543
  %v1114 = vunpack.c.h.b16 %v543
  %v1115 = vunpack.c.l.b16 %v544
  %v1116 = vunpack.c.h.b16 %v544
  %v1117 = vunpack.c.l.b16 %v545
  %v1118 = vunpack.c.h.b16 %v545
  %v1119 = vunpack.c.l.b16 %v546
  %v1120 = vunpack.c.h.b16 %v546
  %v1121 = vunpack.c.l.b16 %v547
  %v1122 = vunpack.c.h.b16 %v547
  %v1123 = vunpack.c.l.b16 %v548
  %v1124 = vunpack.c.h.b16 %v548
  %v1125 = vunpack.c.l.b16 %v549
  %v1126 = vunpack.c.h.b16 %v549
  %v1127 = vunpack.c.l.b16 %v550
  %v1128 = vunpack.c.h.b16 %v550
  %v1129 = vunpack.c.l.b16 %v551
  %v1130 = vunpack.c.h.b16 %v551
  %v1131 = vunpack.c.l.b16 %v552
  %v1132 = vunpack.c.h.b16 %v552
  %v1133 = vunpack.c.l.b16 %v553
  %v1134 = vunpack.c.h.b16 %v553
  %v1135 = vunpack.c.l.b16 %v554
  %v1136 = vunpack.c.h.b16 %v554
  %v1137 = vunpack.c.l.b16 %v555
  %v1138 = vunpack.c.h.b16 %v555
  %v1139 = vunpack.c.l.b16 %v556
  %v1140 = vunpack.c.h.b16 %v556
  %v1141 = vunpack.c.l.b16 %v557
  %v1142 = vunpack.c.h.b16 %v557
  %v1143 = vunpack.c.l.b16 %v558
  %v1144 = vunpack.c.h.b16 %v558
  %v1145 = vunpack.c.l.b16 %v559
  %v1146 = vunpack.c.h.b16 %v559
  %v1147 = vunpack.c.l.b16 %v560
  %v1148 = vunpack.c.h.b16 %v560
  %v1149 = vunpack.c.l.b16 %v561
  %v1150 = vunpack.c.h.b16 %v561
  %v1151 = vunpack.c.l.b16 %v562
  %v1152 = vunpack.c.h.b16 %v562
  %v1153 = vunpack.c.l.b16 %v563
  %v1154 = vunpack.c.h.b16 %v563
  %v1155 = vunpack.c.l.b16 %v564
  %v1156 = vunpack.c.h.b16 %v564
  %v1157 = vunpack.c.l.b16 %v565
  %v1158 = vunpack.c.h.b16 %v565
  %v1159 = vunpack.c.l.b16 %v566
  %v1160 = vunpack.c.h.b16 %v566
  %v1161 = vunpack.c.l.b16 %v567
  %v1162 = vunpack.c.h.b16 %v567
  %v1163 = vunpack.c.l.b16 %v568
  %v1164 = vunpack.c.h.b16 %v568
  %v1165 = vunpack.c.l.b16 %v569
  %v1166 = vunpack.c.h.b16 %v569
  %v1167 = vunpack.c.l.b16 %v570
  %v1168 = vunpack.c.h.b16 %v570
  %v1169 = vunpack.c.l.b16 %v571
  %v1170 = vunpack.c.h.b16 %v571
  %v1171 = vunpack.c.l.b16 %v572
  %v1172 = vunpack.c.h.b16 %v572
  %v1173 = vunpack.c.l.b16 %v573
  %v1174 = vunpack.c.h.b16 %v573
  %v1175 = vunpack.c.l.b16 %v574
  %v1176 = vunpack.c.h.b16 %v574
  %v1177 = vunpack.c.l.b16 %v575
  %v1178 = vunpack.c.h.b16 %v575
  %v1179 = vunpack.c.l.b16 %v576
  %v1180 = vunpack.c.h.b16 %v576
  %v1181 = vunpack.c.l.b16 %v577
  %v1182 = vunpack.c.h.b16 %v577
  %v1183 = vunpack.c.l.b16 %v578
  %v1184 = vunpack.c.h.b16 %v578
  %v1185 = vunpack.c.l.b16 %v579
  %v1186 = vunpack.c.h.b16 %v579
  %v1187 = vunpack.c.l.b16 %v580
  %v1188 = vunpack.c.h.b16 %v580
  %v1189 = vunpack.c.l.b16 %v581
  %v1190 = vunpack.c.h.b16 %v581
  %v1191 = vunpack.c.l.b16 %v582
  %v1192 = vunpack.c.h.b16 %v582
  %v1193 = vunpack.c.l.b16 %v583
  %v1194 = vunpack.c.h.b16 %v583
  %v1195 = vunpack.c.l.b16 %v584
  %v1196 = vunpack.c.h.b16 %v584
  %v1197 = vunpack.c.l.b16 %v585
  %v1198 = vunpack.c.h.b16 %v585
  %v1199 = vunpack.c.l.b16 %v586
  %v1200 = vunpack.c.h.b16 %v586
  %v1201 = vunpack.c.l.b16 %v587
  %v1202 = vunpack.c.h.b16 %v587
  %v1203 = vunpack.c.l.b16 %v588
  %v1204 = vunpack.c.h.b16 %v588
  %v1205 = vunpack.c.l.b16 %v589
  %v1206 = vunpack.c.h.b16 %v589
  %v1207 = vunpack.c.l.b16 %v590
  %v1208 = vunpack.c.h.b16 %v590
  %v1209 = vunpack.c.l.b16 %v591
  %v1210 = vunpack.c.h.b16 %v591
  %v1211 = vunpack.c.l.b16 %v592
  %v1212 = vunpack.c.h.b16 %v592
  %v1213 = vunpack.c.l.b16 %v593
  %v1214 = vunpack.c.h.b16 %v593
  %v1215 = vunpack.c.l.b16 %v594
  %v1216 = vunpack.c.h.b16 %v594
  %v1217 = vunpack.c.l.b16 %v595
  %v1218 = vunpack.c.h.b16 %v595
  %v1219 = vunpack.c.l.b16 %v596
  %v1220 = vunpack.c.h.b16 %v596
  %v1221 = vunpack.c.l.b16 %v597
  %v1222 = vunpack.c.h.b16 %v597
  %v1223 = vunpack.c.l.b16 %v598
  %v1224 = vunpack.c.h.b16 %v598
  %v1225 = vunpack.c.l.b16 %v599
  %v1226 = vunpack.c.h.b16 %v599
  %v1227 = vunpack.c.l.b16 %v600
  %v1228 = vunpack.c.h.b16 %v600
  %v1229 = vunpack.c.l.b16 %v601
  %v1230 = vunpack.c.h.b16 %v601
  %v1231 = vunpack.c.l.b16 %v602
  %v1232 = vunpack.c.h.b16 %v602
  %v1233 = vunpack.c.l.b16 %v603
  %v1234 = vunpack.c.h.b16 %v603
  %v1235 = vunpack.c.l.b16 %v604
  %v1236 = vunpack.c.h.b16 %v604
  %v1237 = vunpack.c.l.b16 %v605
  %v1238 = vunpack.c.h.b16 %v605
  %v1239 = vunpack.c.l.b16 %v606
  %v1240 = vunpack.c.h.b16 %v606
  %v1241 = vunpack.c.l.b16 %v607
  %v1242 = vunpack.c.h.b16 %v607
  %v1243 = vunpack.c.l.b16 %v608
  %v1244 = vunpack.c.h.b16 %v608
  %v1245 = vunpack.c.l.b16 %v609
  %v1246 = vunpack.c.h.b16 %v609
  %v1247 = vunpack.c.l.b16 %v610
  %v1248 = vunpack.c.h.b16 %v610
  %v1249 = vunpack.c.l.b16 %v611
  %v1250 = vunpack.c.h.b16 %v611
  %v1251 = vunpack.c.l.b16 %v612
  %v1252 = vunpack.c.h.b16 %v612
  %v1253 = vunpack.c.l.b16 %v613
  %v1254 = vunpack.c.h.b16 %v613
  %v1255 = vunpack.c.l.b16 %v614
  %v1256 = vunpack.c.h.b16 %v614
  %v1257 = vunpack.c.l.b16 %v615
  %v1258 = vunpack.c.h.b16 %v615
  %v1259 = vunpack.c.l.b16 %v616
  %v1260 = vunpack.c.h.b16 %v616
  %v1261 = vunpack.c.l.b16 %v617
  %v1262 = vunpack.c.h.b16 %v617
  %v1263 = vunpack.c.l.b16 %v618
  %v1264 = vunpack.c.h.b16 %v618
  %v1265 = vunpack.c.l.b16 %v619
  %v1266 = vunpack.c.h.b16 %v619
  %v1267 = vunpack.c.l.b16 %v620
  %v1268 = vunpack.c.h.b16 %v620
  %v1269 = vunpack.c.l.b16 %v621
  %v1270 = vunpack.c.h.b16 %v621
  %v1271 = vunpack.c.l.b16 %v622
  %v1272 = vunpack.c.h.b16 %v622
  %v1273 = vunpack.c.l.b16 %v623
  %v1274 = vunpack.c.h.b16 %v623
  %v1275 = vunpack.c.l.b16 %v624
  %v1276 = vunpack.c.h.b16 %v624
  %v1277 = vunpack.c.l.b16 %v625
  %v1278 = vunpack.c.h.b16 %v625
  %v1279 = vunpack.c.l.b16 %v626
  %v1280 = vunpack.c.h.b16 %v626
  %v1281 = vunpack.c.l.b16 %v627
  %v1282 = vunpack.c.h.b16 %v627
  %v1283 = vunpack.c.l.b16 %v628
  %v1284 = vunpack.c.h.b16 %v628
  %v1285 = vunpack.c.l.b16 %v629
  %v1286 = vunpack.c.h.b16 %v629
  %v1287 = vunpack.c.l.b16 %v630
  %v1288 = vunpack.c.h.b16 %v630
  %v1289 = vunpack.c.l.b16 %v631
  %v1290 = vunpack.c.h.b16 %v631
  %v1291 = vunpack.c.l.b16 %v632
  %v1292 = vunpack.c.h.b16 %v632
  %v1293 = vunpack.c.l.b16 %v633
  %v1294 = vunpack.c.h.b16 %v633
  %v1295 = vunpack.c.l.b16 %v634
  %v1296 = vunpack.c.h.b16 %v634
  %v1297 = vunpack.c.l.b16 %v635
  %v1298 = vunpack.c.h.b16 %v635
  %v1299 = vunpack.c.l.b16 %v636
  %v1300 = vunpack.c.h.b16 %v636
  %v1301 = vunpack.c.l.b16 %v637
  %v1302 = vunpack.c.h.b16 %v637
  %v1303 = vunpack.c.l.b16 %v638
  %v1304 = vunpack.c.h.b16 %v638
  %v1305 = vunpack.c.l.b16 %v639
  %v1306 = vunpack.c.h.b16 %v639
  %v1307 = vunpack.c.l.b16 %v640
  %v1308 = vunpack.c.h.b16 %v640
  %v1309 = vunpack.c.l.b16 %v641
  %v1310 = vunpack.c.h.b16 %v641
  %v1311 = vunpack.c.l.b16 %v642
  %v1312 = vunpack.c.h.b16 %v642
  %v1313 = vunpack.c.l.b16 %v643
  %v1314 = vunpack.c.h.b16 %v643
  %v1315 = vunpack.c.l.b16 %v644
  %v1316 = vunpack.c.h.b16 %v644
  %v1317 = vunpack.c.l.b16 %v645
  %v1318 = vunpack.c.h.b16 %v645
  %v1319 = vunpack.c.l.b16 %v646
  %v1320 = vunpack.c.h.b16 %v646
  %v1321 = vunpack.c.l.b16 %v647
  %v1322 = vunpack.c.h.b16 %v647
  %v1323 = vunpack.c.l.b16 %v648
  %v1324 = vunpack.c.h.b16 %v648
  %v1325 = vunpack.c.l.b16 %v649
  %v1326 = vunpack.c.h.b16 %v649
  %v1327 = vunpack.c.l.b16 %v650
  %v1328 = vunpack.c.h.b16 %v650
  %v1329 = vunpack.c.l.b16 %v651
  %v1330 = vunpack.c.h.b16 %v651
  %v1331 = vunpack.c.l.b16 %v652
  %v1332 = vunpack.c.h.b16 %v652
  %v1333 = vunpack.c.l.b16 %v653
  %v1334 = vunpack.c.h.b16 %v653
  %v1335 = vunpack.c.l.b16 %v654
  %v1336 = vunpack.c.h.b16 %v654
  %v1337 = vunpack.c.l.b16 %v655
  %v1338 = vunpack.c.h.b16 %v655
  %v1339 = vunpack.c.l.b16 %v656
  %v1340 = vunpack.c.h.b16 %v656
  %v1341 = vunpack.c.l.b16 %v657
  %v1342 = vunpack.c.h.b16 %v657
  %v1343 = vunpack.c.l.b16 %v658
  %v1344 = vunpack.c.h.b16 %v658
  %v1345 = vunpack.c.l.b16 %v659
  %v1346 = vunpack.c.h.b16 %v659
  %v1347 = vunpack.c.l.b16 %v660
  %v1348 = vunpack.c.h.b16 %v660
  %v1349 = vunpack.c.l.b16 %v661
  %v1350 = vunpack.c.h.b16 %v661
  %v1351 = vunpack.c.l.b16 %v662
  %v1352 = vunpack.c.h.b16 %v662
  %v1353 = vunpack.c.l.b16 %v663
  %v1354 = vunpack.c.h.b16 %v663
  %v1355 = vunpack.c.l.b16 %v664
  %v1356 = vunpack.c.h.b16 %v664
  %v1357 = vunpack.c.l.b16 %v665
  %v1358 = vunpack.c.h.b16 %v665
  %v1359 = vunpack.c.l.b16 %v666
  %v1360 = vunpack.c.h.b16 %v666
  %v1361 = vunpack.c.l.b16 %v667
  %v1362 = vunpack.c.h.b16 %v667
  %v1363 = vunpack.c.l.b16 %v668
  %v1364 = vunpack.c.h.b16 %v668
  %v1365 = vunpack.c.l.b16 %v669
  %v1366 = vunpack.c.h.b16 %v669
  %v1367 = vunpack.c.l.b16 %v670
  %v1368 = vunpack.c.h.b16 %v670
  %v1369 = vunpack.c.l.b16 %v671
  %v1370 = vunpack.c.h.b16 %v671
  %v1371 = vunpack.c.l.b16 %v672
  %v1372 = vunpack.c.h.b16 %v672
  %v1373 = vunpack.c.l.b16 %v673
  %v1374 = vunpack.c.h.b16 %v673
  %v1375 = vunpack.c.l.b16 %v674
  %v1376 = vunpack.c.h.b16 %v674
  %v1377 = vunpack.c.l.b16 %v675
  %v1378 = vunpack.c.h.b16 %v675
  %v1379 = vunpack.c.l.b16 %v676
  %v1380 = vunpack.c.h.b16 %v676
  %v1381 = vunpack.c.l.b16 %v677
  %v1382 = vunpack.c.h.b16 %v677
  %v1383 = vunpack.c.l.b16 %v678
  %v1384 = vunpack.c.h.b16 %v678
  %v1385 = vunpack.c.l.b16 %v679
  %v1386 = vunpack.c.h.b16 %v679
  %v1387 = vunpack.c.l.b16 %v680
  %v1388 = vunpack.c.h.b16 %v680
  %v1389 = vunpack.c.l.b16 %v681
  %v1390 = vunpack.c.h.b16 %v681
  %v1391 = vunpack.c.l.b16 %v682
  %v1392 = vunpack.c.h.b16 %v682
  %v1393 = vunpack.c.l.b16 %v683
  %v1394 = vunpack.c.h.b16 %v683
  %v1395 = vunpack.c.l.b16 %v684
  %v1396 = vunpack.c.h.b16 %v684
  %v1397 = vunpack.c.l.b16 %v685
  %v1398 = vunpack.c.h.b16 %v685
  %v1399 = vunpack.c.l.b16 %v686
  %v1400 = vunpack.c.h.b16 %v686
  %v1401 = vunpack.c.l.b16 %v687
  %v1402 = vunpack.c.h.b16 %v687
  %v1403 = vunpack.c.l.b16 %v688
  %v1404 = vunpack.c.h.b16 %v688
  %v1405 = vunpack.c.l.b16 %v689
  %v1406 = vunpack.c.h.b16 %v689
  %v1407 = vunpack.c.l.b16 %v690
  %v1408 = vunpack.c.h.b16 %v690
  %v1409 = vunpack.c.l.b16 %v691
  %v1410 = vunpack.c.h.b16 %v691
  %v1411 = vunpack.c.l.b16 %v692
  %v1412 = vunpack.c.h.b16 %v692
  %v1413 = vunpack.c.l.b16 %v693
  %v1414 = vunpack.c.h.b16 %v693
  %v1415 = vunpack.c.l.b16 %v694
  %v1416 = vunpack.c.h.b16 %v694
  %v1417 = vunpack.c.l.b16 %v695
  %v1418 = vunpack.c.h.b16 %v695
  %v1419 = vunpack.c.l.b16 %v696
  %v1420 = vunpack.c.h.b16 %v696
  %v1421 = vunpack.c.l.b16 %v697
  %v1422 = vunpack.c.h.b16 %v697
  %v1423 = vunpack.c.l.b16 %v698
  %v1424 = vunpack.c.h.b16 %v698
  %v1425 = vunpack.c.l.b16 %v699
  %v1426 = vunpack.c.h.b16 %v699
  %v1427 = vunpack.c.l.b16 %v700
  %v1428 = vunpack.c.h.b16 %v700
  %v1429 = vunpack.c.l.b16 %v701
  %v1430 = vunpack.c.h.b16 %v701
  %v1431 = vunpack.c.l.b16 %v702
  %v1432 = vunpack.c.h.b16 %v702
  %v1433 = vunpack.c.l.b16 %v703
  %v1434 = vunpack.c.h.b16 %v703
  %v1435 = vunpack.c.l.b16 %v704
  %v1436 = vunpack.c.h.b16 %v704
  %v1437 = vunpack.c.l.b16 %v705
  %v1438 = vunpack.c.h.b16 %v705
  %v1439 = vunpack.c.l.b16 %v706
  %v1440 = vunpack.c.h.b16 %v706
  %v1441 = vunpack.c.l.b16 %v707
  %v1442 = vunpack.c.h.b16 %v707
  %v1443 = vunpack.c.l.b16 %v708
  %v1444 = vunpack.c.h.b16 %v708
  %v1445 = vunpack.c.l.b16 %v709
  %v1446 = vunpack.c.h.b16 %v709
  %v1447 = vunpack.c.l.b16 %v710
  %v1448 = vunpack.c.h.b16 %v710
  %v1449 = vunpack.c.l.b16 %v711
  %v1450 = vunpack.c.h.b16 %v711
  %v1451 = vunpack.c.l.b16 %v712
  %v1452 = vunpack.c.h.b16 %v712
  %v1453 = vunpack.c.l.b16 %v713
  %v1454 = vunpack.c.h.b16 %v713
  %v1455 = vunpack.c.l.b16 %v714
  %v1456 = vunpack.c.h.b16 %v714
  %v1457 = vunpack.c.l.b16 %v715
  %v1458 = vunpack.c.h.b16 %v715
  %v1459 = vunpack.c.l.b16 %v716
  %v1460 = vunpack.c.h.b16 %v716
  %v1461 = vunpack.c.l.b16 %v717
  %v1462 = vunpack.c.h.b16 %v717
  %v1463 = vunpack.c.l.b16 %v718
  %v1464 = vunpack.c.h.b16 %v718
  %v1465 = vunpack.c.l.b16 %v719
  %v1466 = vunpack.c.h.b16 %v719
  %v1467 = vunpack.c.l.b16 %v720
  %v1468 = vunpack.c.h.b16 %v720
  %v1469 = vunpack.c.l.b16 %v721
  %v1470 = vunpack.c.h.b16 %v721
  %v1471 = vunpack.c.l.b16 %v722
  %v1472 = vunpack.c.h.b16 %v722
  %v1473 = vunpack.c.l.b16 %v723
  %v1474 = vunpack.c.h.b16 %v723
  %v1475 = vunpack.c.l.b16 %v724
  %v1476 = vunpack.c.h.b16 %v724
  %v1477 = vunpack.c.l.b16 %v725
  %v1478 = vunpack.c.h.b16 %v725
  %v1479 = vunpack.c.l.b16 %v726
  %v1480 = vunpack.c.h.b16 %v726
  %v1481 = vunpack.c.l.b16 %v727
  %v1482 = vunpack.c.h.b16 %v727
  %v1483 = vunpack.c.l.b16 %v728
  %v1484 = vunpack.c.h.b16 %v728
  %v1485 = vunpack.c.l.b16 %v729
  %v1486 = vunpack.c.h.b16 %v729
  %v1487 = vunpack.c.l.b16 %v730
  %v1488 = vunpack.c.h.b16 %v730
  %v1489 = vunpack.c.l.b16 %v731
  %v1490 = vunpack.c.h.b16 %v731
  %v1491 = vunpack.c.l.b16 %v732
  %v1492 = vunpack.c.h.b16 %v732
  %v1493 = vunpack.c.l.b16 %v733
  %v1494 = vunpack.c.h.b16 %v733
  %v1495 = vunpack.c.l.b16 %v734
  %v1496 = vunpack.c.h.b16 %v734
  %v1497 = vunpack.c.l.b16 %v735
  %v1498 = vunpack.c.h.b16 %v735
  %v1499 = vunpack.c.l.b16 %v736
  %v1500 = vunpack.c.h.b16 %v736
  %v1501 = vunpack.c.l.b16 %v737
  %v1502 = vunpack.c.h.b16 %v737
  %v1503 = vunpack.c.l.b16 %v738
  %v1504 = vunpack.c.h.b16 %v738
  %v1505 = vunpack.c.l.b16 %v739
  %v1506 = vunpack.c.h.b16 %v739
  %v1507 = vunpack.c.l.b16 %v740
  %v1508 = vunpack.c.h.b16 %v740
  %v1509 = vunpack.c.l.b16 %v741
  %v1510 = vunpack.c.h.b16 %v741
  %v1511 = vunpack.c.l.b16 %v742
  %v1512 = vunpack.c.h.b16 %v742
  %v1513 = vunpack.c.l.b16 %v743
  %v1514 = vunpack.c.h.b16 %v743
  %v1515 = vunpack.c.l.b16 %v744
  %v1516 = vunpack.c.h.b16 %v744
  %v1517 = vunpack.c.l.b16 %v745
  %v1518 = vunpack.c.h.b16 %v745
  %v1519 = vunpack.c.l.b16 %v746
  %v1520 = vunpack.c.h.b16 %v746
  %v1521 = vunpack.c.l.b16 %v747
  %v1522 = vunpack.c.h.b16 %v747
  %v1523 = vunpack.c.l.b16 %v748
  %v1524 = vunpack.c.h.b16 %v748
  %v1525 = vunpack.c.l.b16 %v749
  %v1526 = vunpack.c.h.b16 %v749
  %v1527 = vunpack.c.l.b16 %v750
  %v1528 = vunpack.c.h.b16 %v750
  %v1529 = vunpack.c.l.b16 %v751
  %v1530 = vunpack.c.h.b16 %v751
  %v1531 = vunpack.c.l.b16 %v752
  %v1532 = vunpack.c.h.b16 %v752
  %v1533 = vunpack.c.l.b16 %v753
  %v1534 = vunpack.c.h.b16 %v753
  %v1535 = vunpack.c.l.b16 %v754
  %v1536 = vunpack.c.h.b16 %v754
  %v1537 = vunpack.c.l.b16 %v755
  %v1538 = vunpack.c.h.b16 %v755
  %v1539 = vunpack.c.l.b16 %v756
  %v1540 = vunpack.c.h.b16 %v756
  %v1541 = vunpack.c.l.b16 %v757
  %v1542 = vunpack.c.h.b16 %v757
  %v1543 = vunpack.c.l.b16 %v758
  %v1544 = vunpack.c.h.b16 %v758
  %v1545 = vunpack.c.l.b16 %v759
  %v1546 = vunpack.c.h.b16 %v759
  %v1547 = vunpack.c.l.b16 %v760
  %v1548 = vunpack.c.h.b16 %v760
  %v1549 = vunpack.c.l.b16 %v761
  %v1550 = vunpack.c.h.b16 %v761
  %v1551 = vunpack.c.l.b16 %v762
  %v1552 = vunpack.c.h.b16 %v762
  %v1553 = vpack.c.b16 %v1045, %v1041
  %v1554 = vpack.c.b16 %v1046, %v1042
  %v1555 = vpack.c.b16 %v1047, %v1043
  %v1556 = vpack.c.b16 %v1048, %v1044
  %v1557 = vpack.c.b16 %v1053, %v1049
  %v1558 = vpack.c.b16 %v1054, %v1050
  %v1559 = vpack.c.b16 %v1055, %v1051
  %v1560 = vpack.c.b16 %v1056, %v1052
  %v1561 = vpack.c.b16 %v1061, %v1057
  %v1562 = vpack.c.b16 %v1062, %v1058
  %v1563 = vpack.c.b16 %v1063, %v1059
  %v1564 = vpack.c.b16 %v1064, %v1060
  %v1565 = vpack.c.b16 %v1069, %v1065
  %v1566 = vpack.c.b16 %v1070, %v1066
  %v1567 = vpack.c.b16 %v1071, %v1067
  %v1568 = vpack.c.b16 %v1072, %v1068
  %v1569 = vpack.c.b16 %v1077, %v1073
  %v1570 = vpack.c.b16 %v1078, %v1074
  %v1571 = vpack.c.b16 %v1079, %v1075
  %v1572 = vpack.c.b16 %v1080, %v1076
  %v1573 = vpack.c.b16 %v1085, %v1081
  %v1574 = vpack.c.b16 %v1086, %v1082
  %v1575 = vpack.c.b16 %v1087, %v1083
  %v1576 = vpack.c.b16 %v1088, %v1084
  %v1577 = vpack.c.b16 %v1093, %v1089
  %v1578 = vpack.c.b16 %v1094, %v1090
  %v1579 = vpack.c.b16 %v1095, %v1091
  %v1580 = vpack.c.b16 %v1096, %v1092
  %v1581 = vpack.c.b16 %v1101, %v1097
  %v1582 = vpack.c.b16 %v1102, %v1098
  %v1583 = vpack.c.b16 %v1103, %v1099
  %v1584 = vpack.c.b16 %v1104, %v1100
  %v1585 = vpack.c.b16 %v1109, %v1105
  %v1586 = vpack.c.b16 %v1110, %v1106
  %v1587 = vpack.c.b16 %v1111, %v1107
  %v1588 = vpack.c.b16 %v1112, %v1108
  %v1589 = vpack.c.b16 %v1117, %v1113
  %v1590 = vpack.c.b16 %v1118, %v1114
  %v1591 = vpack.c.b16 %v1119, %v1115
  %v1592 = vpack.c.b16 %v1120, %v1116
  %v1593 = vpack.c.b16 %v1125, %v1121
  %v1594 = vpack.c.b16 %v1126, %v1122
  %v1595 = vpack.c.b16 %v1127, %v1123
  %v1596 = vpack.c.b16 %v1128, %v1124
  %v1597 = vpack.c.b16 %v1133, %v1129
  %v1598 = vpack.c.b16 %v1134, %v1130
  %v1599 = vpack.c.b16 %v1135, %v1131
  %v1600 = vpack.c.b16 %v1136, %v1132
  %v1601 = vpack.c.b16 %v1141, %v1137
  %v1602 = vpack.c.b16 %v1142, %v1138
  %v1603 = vpack.c.b16 %v1143, %v1139
  %v1604 = vpack.c.b16 %v1144, %v1140
  %v1605 = vpack.c.b16 %v1149, %v1145
  %v1606 = vpack.c.b16 %v1150, %v1146
  %v1607 = vpack.c.b16 %v1151, %v1147
  %v1608 = vpack.c.b16 %v1152, %v1148
  %v1609 = vpack.c.b16 %v1157, %v1153
  %v1610 = vpack.c.b16 %v1158, %v1154
  %v1611 = vpack.c.b16 %v1159, %v1155
  %v1612 = vpack.c.b16 %v1160, %v1156
  %v1613 = vpack.c.b16 %v1165, %v1161
  %v1614 = vpack.c.b16 %v1166, %v1162
  %v1615 = vpack.c.b16 %v1167, %v1163
  %v1616 = vpack.c.b16 %v1168, %v1164
  %v1617 = vpack.c.b16 %v1173, %v1169
  %v1618 = vpack.c.b16 %v1174, %v1170
  %v1619 = vpack.c.b16 %v1175, %v1171
  %v1620 = vpack.c.b16 %v1176, %v1172
  %v1621 = vpack.c.b16 %v1181, %v1177
  %v1622 = vpack.c.b16 %v1182, %v1178
  %v1623 = vpack.c.b16 %v1183, %v1179
  %v1624 = vpack.c.b16 %v1184, %v1180
  %v1625 = vpack.c.b16 %v1189, %v1185
  %v1626 = vpack.c.b16 %v1190, %v1186
  %v1627 = vpack.c.b16 %v1191, %v1187
  %v1628 = vpack.c.b16 %v1192, %v1188
  %v1629 = vpack.c.b16 %v1197, %v1193
  %v1630 = vpack.c.b16 %v1198, %v1194
  %v1631 = vpack.c.b16 %v1199, %v1195
  %v1632 = vpack.c.b16 %v1200, %v1196
  %v1633 = vpack.c.b16 %v1205, %v1201
  %v1634 = vpack.c.b16 %v1206, %v1202
  %v1635 = vpack.c.b16 %v1207, %v1203
  %v1636 = vpack.c.b16 %v1208, %v1204
  %v1637 = vpack.c.b16 %v1213, %v1209
  %v1638 = vpack.c.b16 %v1214, %v1210
  %v1639 = vpack.c.b16 %v1215, %v1211
  %v1640 = vpack.c.b16 %v1216, %v1212
  %v1641 = vpack.c.b16 %v1221, %v1217
  %v1642 = vpack.c.b16 %v1222, %v1218
  %v1643 = vpack.c.b16 %v1223, %v1219
  %v1644 = vpack.c.b16 %v1224, %v1220
  %v1645 = vpack.c.b16 %v1229, %v1225
  %v1646 = vpack.c.b16 %v1230, %v1226
  %v1647 = vpack.c.b16 %v1231, %v1227
  %v1648 = vpack.c.b16 %v1232, %v1228
  %v1649 = vpack.c.b16 %v1237, %v1233
  %v1650 = vpack.c.b16 %v1238, %v1234
  %v1651 = vpack.c.b16 %v1239, %v1235
  %v1652 = vpack.c.b16 %v1240, %v1236
  %v1653 = vpack.c.b16 %v1245, %v1241
  %v1654 = vpack.c.b16 %v1246, %v1242
  %v1655 = vpack.c.b16 %v1247, %v1243
  %v1656 = vpack.c.b16 %v1248, %v1244
  %v1657 = vpack.c.b16 %v1253, %v1249
  %v1658 = vpack.c.b16 %v1254, %v1250
  %v1659 = vpack.c.b16 %v1255, %v1251
  %v1660 = vpack.c.b16 %v1256, %v1252
  %v1661 = vpack.c.b16 %v1261, %v1257
  %v1662 = vpack.c.b16 %v1262, %v1258
  %v1663 = vpack.c.b16 %v1263, %v1259
  %v1664 = vpack.c.b16 %v1264, %v1260
  %v1665 = vpack.c.b16 %v1269, %v1265
  %v1666 = vpack.c.b16 %v1270, %v1266
  %v1667 = vpack.c.b16 %v1271, %v1267
  %v1668 = vpack.c.b16 %v1272, %v1268
  %v1669 = vpack.c.b16 %v1277, %v1273
  %v1670 = vpack.c.b16 %v1278, %v1274
  %v1671 = vpack.c.b16 %v1279, %v1275
  %v1672 = vpack.c.b16 %v1280, %v1276
  %v1673 = vpack.c.b16 %v1285, %v1281
  %v1674 = vpack.c.b16 %v1286, %v1282
  %v1675 = vpack.c.b16 %v1287, %v1283
  %v1676 = vpack.c.b16 %v1288, %v1284
  %v1677 = vpack.c.b16 %v1293, %v1289
  %v1678 = vpack.c.b16 %v1294, %v1290
  %v1679 = vpack.c.b16 %v1295, %v1291
  %v1680 = vpack.c.b16 %v1296, %v1292
  %v1681 = vpack.c.b16 %v1301, %v1297
  %v1682 = vpack.c.b16 %v1302, %v1298
  %v1683 = vpack.c.b16 %v1303, %v1299
  %v1684 = vpack.c.b16 %v1304, %v1300
  %v1685 = vpack.c.b16 %v1309, %v1305
  %v1686 = vpack.c.b16 %v1310, %v1306
  %v1687 = vpack.c.b16 %v1311, %v1307
  %v1688 = vpack.c.b16 %v1312, %v1308
  %v1689 = vpack.c.b16 %v1317, %v1313
  %v1690 = vpack.c.b16 %v1318, %v1314
  %v1691 = vpack.c.b16 %v1319, %v1315
  %v1692 = vpack.c.b16 %v1320, %v1316
  %v1693 = vpack.c.b16 %v1325, %v1321
  %v1694 = vpack.c.b16 %v1326, %v1322
  %v1695 = vpack.c.b16 %v1327, %v1323
  %v1696 = vpack.c.b16 %v1328, %v1324
  %v1697 = vpack.c.b16 %v1333, %v1329
  %v1698 = vpack.c.b16 %v1334, %v1330
  %v1699 = vpack.c.b16 %v1335, %v1331
  %v1700 = vpack.c.b16 %v1336, %v1332
  %v1701 = vpack.c.b16 %v1341, %v1337
  %v1702 = vpack.c.b16 %v1342, %v1338
  %v1703 = vpack.c.b16 %v1343, %v1339
  %v1704 = vpack.c.b16 %v1344, %v1340
  %v1705 = vpack.c.b16 %v1349, %v1345
  %v1706 = vpack.c.b16 %v1350, %v1346
  %v1707 = vpack.c.b16 %v1351, %v1347
  %v1708 = vpack.c.b16 %v1352, %v1348
  %v1709 = vpack.c.b16 %v1357, %v1353
  %v1710 = vpack.c.b16 %v1358, %v1354
  %v1711 = vpack.c.b16 %v1359, %v1355
  %v1712 = vpack.c.b16 %v1360, %v1356
  %v1713 = vpack.c.b16 %v1365, %v1361
  %v1714 = vpack.c.b16 %v1366, %v1362
  %v1715 = vpack.c.b16 %v1367, %v1363
  %v1716 = vpack.c.b16 %v1368, %v1364
  %v1717 = vpack.c.b16 %v1373, %v1369
  %v1718 = vpack.c.b16 %v1374, %v1370
  %v1719 = vpack.c.b16 %v1375, %v1371
  %v1720 = vpack.c.b16 %v1376, %v1372
  %v1721 = vpack.c.b16 %v1381, %v1377
  %v1722 = vpack.c.b16 %v1382, %v1378
  %v1723 = vpack.c.b16 %v1383, %v1379
  %v1724 = vpack.c.b16 %v1384, %v1380
  %v1725 = vpack.c.b16 %v1389, %v1385
  %v1726 = vpack.c.b16 %v1390, %v1386
  %v1727 = vpack.c.b16 %v1391, %v1387
  %v1728 = vpack.c.b16 %v1392, %v1388
  %v1729 = vpack.c.b16 %v1397, %v1393
  %v1730 = vpack.c.b16 %v1398, %v1394
  %v1731 = vpack.c.b16 %v1399, %v1395
  %v1732 = vpack.c.b16 %v1400, %v1396
  %v1733 = vpack.c.b16 %v1405, %v1401
  %v1734 = vpack.c.b16 %v1406, %v1402
  %v1735 = vpack.c.b16 %v1407, %v1403
  %v1736 = vpack.c.b16 %v1408, %v1404
  %v1737 = vpack.c.b16 %v1413, %v1409
  %v1738 = vpack.c.b16 %v1414, %v1410
  %v1739 = vpack.c.b16 %v1415, %v1411
  %v1740 = vpack.c.b16 %v1416, %v1412
  %v1741 = vpack.c.b16 %v1421, %v1417
  %v1742 = vpack.c.b16 %v1422, %v1418
  %v1743 = vpack.c.b16 %v1423, %v1419
  %v1744 = vpack.c.b16 %v1424, %v1420
  %v1745 = vpack.c.b16 %v1429, %v1425
  %v1746 = vpack.c.b16 %v1430, %v1426
  %v1747 = vpack.c.b16 %v1431, %v1427
  %v1748 = vpack.c.b16 %v1432, %v1428
  %v1749 = vpack.c.b16 %v1437, %v1433
  %v1750 = vpack.c.b16 %v1438, %v1434
  %v1751 = vpack.c.b16 %v1439, %v1435
  %v1752 = vpack.c.b16 %v1440, %v1436
  %v1753 = vpack.c.b16 %v1445, %v1441
  %v1754 = vpack.c.b16 %v1446, %v1442
  %v1755 = vpack.c.b16 %v1447, %v1443
  %v1756 = vpack.c.b16 %v1448, %v1444
  %v1757 = vpack.c.b16 %v1453, %v1449
  %v1758 = vpack.c.b16 %v1454, %v1450
  %v1759 = vpack.c.b16 %v1455, %v1451
  %v1760 = vpack.c.b16 %v1456, %v1452
  %v1761 = vpack.c.b16 %v1461, %v1457
  %v1762 = vpack.c.b16 %v1462, %v1458
  %v1763 = vpack.c.b16 %v1463, %v1459
  %v1764 = vpack.c.b16 %v1464, %v1460
  %v1765 = vpack.c.b16 %v1469, %v1465
  %v1766 = vpack.c.b16 %v1470, %v1466
  %v1767 = vpack.c.b16 %v1471, %v1467
  %v1768 = vpack.c.b16 %v1472, %v1468
  %v1769 = vpack.c.b16 %v1477, %v1473
  %v1770 = vpack.c.b16 %v1478, %v1474
  %v1771 = vpack.c.b16 %v1479, %v1475
  %v1772 = vpack.c.b16 %v1480, %v1476
  %v1773 = vpack.c.b16 %v1485, %v1481
  %v1774 = vpack.c.b16 %v1486, %v1482
  %v1775 = vpack.c.b16 %v1487, %v1483
  %v1776 = vpack.c.b16 %v1488, %v1484
  %v1777 = vpack.c.b16 %v1493, %v1489
  %v1778 = vpack.c.b16 %v1494, %v1490
  %v1779 = vpack.c.b16 %v1495, %v1491
  %v1780 = vpack.c.b16 %v1496, %v1492
  %v1781 = vpack.c.b16 %v1501, %v1497
  %v1782 = vpack.c.b16 %v1502, %v1498
  %v1783 = vpack.c.b16 %v1503, %v1499
  %v1784 = vpack.c.b16 %v1504, %v1500
  %v1785 = vpack.c.b16 %v1509, %v1505
  %v1786 = vpack.c.b16 %v1510, %v1506
  %v1787 = vpack.c.b16 %v1511, %v1507
  %v1788 = vpack.c.b16 %v1512, %v1508
  %v1789 = vpack.c.b16 %v1517, %v1513
  %v1790 = vpack.c.b16 %v1518, %v1514
  %v1791 = vpack.c.b16 %v1519, %v1515
  %v1792 = vpack.c.b16 %v1520, %v1516
  %v1793 = vpack.c.b16 %v1525, %v1521
  %v1794 = vpack.c.b16 %v1526, %v1522
  %v1795 = vpack.c.b16 %v1527, %v1523
  %v1796 = vpack.c.b16 %v1528, %v1524
  %v1797 = vpack.c.b16 %v1533, %v1529
  %v1798 = vpack.c.b16 %v1534, %v1530
  %v1799 = vpack.c.b16 %v1535, %v1531
  %v1800 = vpack.c.b16 %v1536, %v1532
  %v1801 = vpack.c.b16 %v1541, %v1537
  %v1802 = vpack.c.b16 %v1542, %v1538
  %v1803 = vpack.c.b16 %v1543, %v1539
  %v1804 = vpack.c.b16 %v1544, %v1540
  %v1805 = vpack.c.b16 %v1549, %v1545
  %v1806 = vpack.c.b16 %v1550, %v1546
  %v1807 = vpack.c.b16 %v1551, %v1547
  %v1808 = vpack.c.b16 %v1552, %v1548
  %2065 = vmatprep.subr.bf16.mxu0 %v1554
  %2066 = vmatpush1.bf16.msra.mxu0 %v1553
  %2067 = vmatprep.subr.bf16.mxu0 %v1558
  %2068 = vmatpush1.bf16.msra.mxu0 %v1557
  %2069 = vmatprep.subr.bf16.mxu0 %v1562
  %2070 = vmatpush1.bf16.msra.mxu0 %v1561
  %2071 = vmatprep.subr.bf16.mxu0 %v1566
  %2072 = vmatpush1.bf16.msra.mxu0 %v1565
  %2073 = vmatprep.subr.bf16.mxu0 %v1570
  %2074 = vmatpush1.bf16.msra.mxu0 %v1569
  %2075 = vmatprep.subr.bf16.mxu0 %v1574
  %2076 = vmatpush1.bf16.msra.mxu0 %v1573
  %2077 = vmatprep.subr.bf16.mxu0 %v1578
  %2078 = vmatpush1.bf16.msra.mxu0 %v1577
  %2079 = vmatprep.subr.bf16.mxu0 %v1582
  %2080 = vmatpush1.bf16.msra.mxu0 %v1581
  %2081 = vmatprep.subr.bf16.mxu0 %v1586
  %2082 = vmatpush1.bf16.msra.mxu0 %v1585
  %2083 = vmatprep.subr.bf16.mxu0 %v1590
  %2084 = vmatpush1.bf16.msra.mxu0 %v1589
  %2085 = vmatprep.subr.bf16.mxu0 %v1594
  %2086 = vmatpush1.bf16.msra.mxu0 %v1593
  %2087 = vmatprep.subr.bf16.mxu0 %v1598
  %2088 = vmatpush1.bf16.msra.mxu0 %v1597
  %2089 = vmatprep.subr.bf16.mxu0 %v1602
  %2090 = vmatpush1.bf16.msra.mxu0 %v1601
  %2091 = vmatprep.subr.bf16.mxu0 %v1606
  %2092 = vmatpush1.bf16.msra.mxu0 %v1605
  %2093 = vmatprep.subr.bf16.mxu0 %v1610
  %2094 = vmatpush1.bf16.msra.mxu0 %v1609
  %2095 = vmatprep.subr.bf16.mxu0 %v1614
  %2096 = vmatpush1.bf16.msra.mxu0 %v1613
  %2097 = vmatprep.mubr.bf16.mxu0 %v500
  %2098 = vmatmul.mubr.bf16.gmra.mrb[0].mxu0 %v499
  %v2099 = vpop.f32.mrb[0].mxu0
  %v2100 = vadd.f32 %v768, %v2099
  %v2101 = vpop.f32.mrb[0].mxu0
  %v2102 = vadd.f32 %v772, %v2101
  %v2103 = vpop.f32.mrb[0].mxu0
  %v2104 = vpop.f32.mrb[0].mxu0
  %2105 = vdwg.mxu0
  %2106 = vmatprep.subr.bf16.mxu0 %v1618
  %2107 = vmatpush1.bf16.msra.mxu0 %v1617
  %2108 = vmatprep.subr.bf16.mxu0 %v1622
  %2109 = vmatpush1.bf16.msra.mxu0 %v1621
  %2110 = vmatprep.subr.bf16.mxu0 %v1626
  %2111 = vmatpush1.bf16.msra.mxu0 %v1625
  %2112 = vmatprep.subr.bf16.mxu0 %v1630
  %2113 = vmatpush1.bf16.msra.mxu0 %v1629
  %2114 = vmatprep.subr.bf16.mxu0 %v1634
  %2115 = vmatpush1.bf16.msra.mxu0 %v1633
  %2116 = vmatprep.subr.bf16.mxu0 %v1638
  %2117 = vmatpush1.bf16.msra.mxu0 %v1637
  %2118 = vmatprep.subr.bf16.mxu0 %v1642
  %2119 = vmatpush1.bf16.msra.mxu0 %v1641
  %2120 = vmatprep.subr.bf16.mxu0 %v1646
  %2121 = vmatpush1.bf16.msra.mxu0 %v1645
  %2122 = vmatprep.subr.bf16.mxu0 %v1650
  %2123 = vmatpush1.bf16.msra.mxu0 %v1649
  %2124 = vmatprep.subr.bf16.mxu0 %v1654
  %2125 = vmatpush1.bf16.msra.mxu0 %v1653
  %2126 = vmatprep.subr.bf16.mxu0 %v1658
  %2127 = vmatpush1.bf16.msra.mxu0 %v1657
  %2128 = vmatprep.subr.bf16.mxu0 %v1662
  %2129 = vmatpush1.bf16.msra.mxu0 %v1661
  %2130 = vmatprep.subr.bf16.mxu0 %v1666
  %2131 = vmatpush1.bf16.msra.mxu0 %v1665
  %2132 = vmatprep.subr.bf16.mxu0 %v1670
  %2133 = vmatpush1.bf16.msra.mxu0 %v1669
  %2134 = vmatprep.subr.bf16.mxu0 %v1674
  %2135 = vmatpush1.bf16.msra.mxu0 %v1673
  %2136 = vmatprep.subr.bf16.mxu0 %v1678
  %2137 = vmatpush1.bf16.msra.mxu0 %v1677
  %2138 = vmatprep.mubr.bf16.mxu0 %v502
  %2139 = vmatmul.mubr.bf16.gmra.mrb[0].mxu0 %v501
  %v2140 = vpop.f32.mrb[0].mxu0
  %v2141 = vadd.f32 %v2100, %v2140
  %v2142 = vpop.f32.mrb[0].mxu0
  %v2143 = vadd.f32 %v2102, %v2142
  %v2144 = vpop.f32.mrb[0].mxu0
  %v2145 = vpop.f32.mrb[0].mxu0
  %2146 = vdwg.mxu0
  %2147 = vmatprep.subr.bf16.mxu0 %v1682
  %2148 = vmatpush1.bf16.msra.mxu0 %v1681
  %2149 = vmatprep.subr.bf16.mxu0 %v1686
  %2150 = vmatpush1.bf16.msra.mxu0 %v1685
  %2151 = vmatprep.subr.bf16.mxu0 %v1690
  %2152 = vmatpush1.bf16.msra.mxu0 %v1689
  %2153 = vmatprep.subr.bf16.mxu0 %v1694
  %2154 = vmatpush1.bf16.msra.mxu0 %v1693
  %2155 = vmatprep.subr.bf16.mxu0 %v1698
  %2156 = vmatpush1.bf16.msra.mxu0 %v1697
  %2157 = vmatprep.subr.bf16.mxu0 %v1702
  %2158 = vmatpush1.bf16.msra.mxu0 %v1701
  %2159 = vmatprep.subr.bf16.mxu0 %v1706
  %2160 = vmatpush1.bf16.msra.mxu0 %v1705
  %2161 = vmatprep.subr.bf16.mxu0 %v1710
  %2162 = vmatpush1.bf16.msra.mxu0 %v1709
  %2163 = vmatprep.subr.bf16.mxu0 %v1714
  %2164 = vmatpush1.bf16.msra.mxu0 %v1713
  %2165 = vmatprep.subr.bf16.mxu0 %v1718
  %2166 = vmatpush1.bf16.msra.mxu0 %v1717
  %2167 = vmatprep.subr.bf16.mxu0 %v1722
  %2168 = vmatpush1.bf16.msra.mxu0 %v1721
  %2169 = vmatprep.subr.bf16.mxu0 %v1726
  %2170 = vmatpush1.bf16.msra.mxu0 %v1725
  %2171 = vmatprep.subr.bf16.mxu0 %v1730
  %2172 = vmatpush1.bf16.msra.mxu0 %v1729
  %2173 = vmatprep.subr.bf16.mxu0 %v1734
  %2174 = vmatpush1.bf16.msra.mxu0 %v1733
  %2175 = vmatprep.subr.bf16.mxu0 %v1738
  %2176 = vmatpush1.bf16.msra.mxu0 %v1737
  %2177 = vmatprep.subr.bf16.mxu0 %v1742
  %2178 = vmatpush1.bf16.msra.mxu0 %v1741
  %2179 = vmatprep.mubr.bf16.mxu0 %v504
  %2180 = vmatmul.mubr.bf16.gmra.mrb[0].mxu0 %v503
  %v2181 = vpop.f32.mrb[0].mxu0
  %v2182 = vadd.f32 %v2141, %v2181
  %v2183 = vpop.f32.mrb[0].mxu0
  %v2184 = vadd.f32 %v2143, %v2183
  %v2185 = vpop.f32.mrb[0].mxu0
  %v2186 = vpop.f32.mrb[0].mxu0
  %2187 = vdwg.mxu0
  %2188 = vmatprep.subr.bf16.mxu0 %v1746
  %2189 = vmatpush1.bf16.msra.mxu0 %v1745
  %2190 = vmatprep.subr.bf16.mxu0 %v1750
  %2191 = vmatpush1.bf16.msra.mxu0 %v1749
  %2192 = vmatprep.subr.bf16.mxu0 %v1754
  %2193 = vmatpush1.bf16.msra.mxu0 %v1753
  %2194 = vmatprep.subr.bf16.mxu0 %v1758
  %2195 = vmatpush1.bf16.msra.mxu0 %v1757
  %2196 = vmatprep.subr.bf16.mxu0 %v1762
  %2197 = vmatpush1.bf16.msra.mxu0 %v1761
  %2198 = vmatprep.subr.bf16.mxu0 %v1766
  %2199 = vmatpush1.bf16.msra.mxu0 %v1765
  %2200 = vmatprep.subr.bf16.mxu0 %v1770
  %2201 = vmatpush1.bf16.msra.mxu0 %v1769
  %2202 = vmatprep.subr.bf16.mxu0 %v1774
  %2203 = vmatpush1.bf16.msra.mxu0 %v1773
  %2204 = vmatprep.subr.bf16.mxu0 %v1778
  %2205 = vmatpush1.bf16.msra.mxu0 %v1777
  %2206 = vmatprep.subr.bf16.mxu0 %v1782
  %2207 = vmatpush1.bf16.msra.mxu0 %v1781
  %2208 = vmatprep.subr.bf16.mxu0 %v1786
  %2209 = vmatpush1.bf16.msra.mxu0 %v1785
  %2210 = vmatprep.subr.bf16.mxu0 %v1790
  %2211 = vmatpush1.bf16.msra.mxu0 %v1789
  %2212 = vmatprep.subr.bf16.mxu0 %v1794
  %2213 = vmatpush1.bf16.msra.mxu0 %v1793
  %2214 = vmatprep.subr.bf16.mxu0 %v1798
  %2215 = vmatpush1.bf16.msra.mxu0 %v1797
  %2216 = vmatprep.subr.bf16.mxu0 %v1802
  %2217 = vmatpush1.bf16.msra.mxu0 %v1801
  %2218 = vmatprep.subr.bf16.mxu0 %v1806
  %2219 = vmatpush1.bf16.msra.mxu0 %v1805
  %2220 = vmatprep.mubr.bf16.mxu0 %v506
  %2221 = vmatmul.mubr.bf16.gmra.mrb[0].mxu0 %v505
  %v2222 = vpop.f32.mrb[0].mxu0
  %v2223 = vadd.f32 %v2182, %v2222
  %v2224 = vpop.f32.mrb[0].mxu0
  %v2225 = vadd.f32 %v2184, %v2224
  %v2226 = vpop.f32.mrb[0].mxu0
  %v2227 = vpop.f32.mrb[0].mxu0
  %2228 = vdwg.mxu0
  %2229 = vmatprep.subr.bf16.mxu0 %v1556
  %2230 = vmatpush1.bf16.msra.mxu0 %v1555
  %2231 = vmatprep.subr.bf16.mxu0 %v1560
  %2232 = vmatpush1.bf16.msra.mxu0 %v1559
  %2233 = vmatprep.subr.bf16.mxu0 %v1564
  %2234 = vmatpush1.bf16.msra.mxu0 %v1563
  %2235 = vmatprep.subr.bf16.mxu0 %v1568
  %2236 = vmatpush1.bf16.msra.mxu0 %v1567
  %2237 = vmatprep.subr.bf16.mxu0 %v1572
  %2238 = vmatpush1.bf16.msra.mxu0 %v1571
  %2239 = vmatprep.subr.bf16.mxu0 %v1576
  %2240 = vmatpush1.bf16.msra.mxu0 %v1575
  %2241 = vmatprep.subr.bf16.mxu0 %v1580
  %2242 = vmatpush1.bf16.msra.mxu0 %v1579
  %2243 = vmatprep.subr.bf16.mxu0 %v1584
  %2244 = vmatpush1.bf16.msra.mxu0 %v1583
  %2245 = vmatprep.subr.bf16.mxu0 %v1588
  %2246 = vmatpush1.bf16.msra.mxu0 %v1587
  %2247 = vmatprep.subr.bf16.mxu0 %v1592
  %2248 = vmatpush1.bf16.msra.mxu0 %v1591
  %2249 = vmatprep.subr.bf16.mxu0 %v1596
  %2250 = vmatpush1.bf16.msra.mxu0 %v1595
  %2251 = vmatprep.subr.bf16.mxu0 %v1600
  %2252 = vmatpush1.bf16.msra.mxu0 %v1599
  %2253 = vmatprep.subr.bf16.mxu0 %v1604
  %2254 = vmatpush1.bf16.msra.mxu0 %v1603
  %2255 = vmatprep.subr.bf16.mxu0 %v1608
  %2256 = vmatpush1.bf16.msra.mxu0 %v1607
  %2257 = vmatprep.subr.bf16.mxu0 %v1612
  %2258 = vmatpush1.bf16.msra.mxu0 %v1611
  %2259 = vmatprep.subr.bf16.mxu0 %v1616
  %2260 = vmatpush1.bf16.msra.mxu0 %v1615
  %2261 = vmatprep.mubr.bf16.mxu0 %v500
  %2262 = vmatmul.mubr.bf16.gmra.mrb[0].mxu0 %v499
  %v2263 = vpop.f32.mrb[0].mxu0
  %v2264 = vadd.f32 %v776, %v2263
  %v2265 = vpop.f32.mrb[0].mxu0
  %v2266 = vadd.f32 %v780, %v2265
  %v2267 = vpop.f32.mrb[0].mxu0
  %v2268 = vpop.f32.mrb[0].mxu0
  %2269 = vdwg.mxu0
  %2270 = vmatprep.subr.bf16.mxu0 %v1620
  %2271 = vmatpush1.bf16.msra.mxu0 %v1619
  %2272 = vmatprep.subr.bf16.mxu0 %v1624
  %2273 = vmatpush1.bf16.msra.mxu0 %v1623
  %2274 = vmatprep.subr.bf16.mxu0 %v1628
  %2275 = vmatpush1.bf16.msra.mxu0 %v1627
  %2276 = vmatprep.subr.bf16.mxu0 %v1632
  %2277 = vmatpush1.bf16.msra.mxu0 %v1631
  %2278 = vmatprep.subr.bf16.mxu0 %v1636
  %2279 = vmatpush1.bf16.msra.mxu0 %v1635
  %2280 = vmatprep.subr.bf16.mxu0 %v1640
  %2281 = vmatpush1.bf16.msra.mxu0 %v1639
  %2282 = vmatprep.subr.bf16.mxu0 %v1644
  %2283 = vmatpush1.bf16.msra.mxu0 %v1643
  %2284 = vmatprep.subr.bf16.mxu0 %v1648
  %2285 = vmatpush1.bf16.msra.mxu0 %v1647
  %2286 = vmatprep.subr.bf16.mxu0 %v1652
  %2287 = vmatpush1.bf16.msra.mxu0 %v1651
  %2288 = vmatprep.subr.bf16.mxu0 %v1656
  %2289 = vmatpush1.bf16.msra.mxu0 %v1655
  %2290 = vmatprep.subr.bf16.mxu0 %v1660
  %2291 = vmatpush1.bf16.msra.mxu0 %v1659
  %2292 = vmatprep.subr.bf16.mxu0 %v1664
  %2293 = vmatpush1.bf16.msra.mxu0 %v1663
  %2294 = vmatprep.subr.bf16.mxu0 %v1668
  %2295 = vmatpush1.bf16.msra.mxu0 %v1667
  %2296 = vmatprep.subr.bf16.mxu0 %v1672
  %2297 = vmatpush1.bf16.msra.mxu0 %v1671
  %2298 = vmatprep.subr.bf16.mxu0 %v1676
  %2299 = vmatpush1.bf16.msra.mxu0 %v1675
  %2300 = vmatprep.subr.bf16.mxu0 %v1680
  %2301 = vmatpush1.bf16.msra.mxu0 %v1679
  %2302 = vmatprep.mubr.bf16.mxu0 %v502
  %2303 = vmatmul.mubr.bf16.gmra.mrb[0].mxu0 %v501
  %v2304 = vpop.f32.mrb[0].mxu0
  %v2305 = vadd.f32 %v2264, %v2304
  %v2306 = vpop.f32.mrb[0].mxu0
  %v2307 = vadd.f32 %v2266, %v2306
  %v2308 = vpop.f32.mrb[0].mxu0
  %v2309 = vpop.f32.mrb[0].mxu0
  %2310 = vdwg.mxu0
  %2311 = vmatprep.subr.bf16.mxu0 %v1684
  %2312 = vmatpush1.bf16.msra.mxu0 %v1683
  %2313 = vmatprep.subr.bf16.mxu0 %v1688
  %2314 = vmatpush1.bf16.msra.mxu0 %v1687
  %2315 = vmatprep.subr.bf16.mxu0 %v1692
  %2316 = vmatpush1.bf16.msra.mxu0 %v1691
  %2317 = vmatprep.subr.bf16.mxu0 %v1696
  %2318 = vmatpush1.bf16.msra.mxu0 %v1695
  %2319 = vmatprep.subr.bf16.mxu0 %v1700
  %2320 = vmatpush1.bf16.msra.mxu0 %v1699
  %2321 = vmatprep.subr.bf16.mxu0 %v1704
  %2322 = vmatpush1.bf16.msra.mxu0 %v1703
  %2323 = vmatprep.subr.bf16.mxu0 %v1708
  %2324 = vmatpush1.bf16.msra.mxu0 %v1707
  %2325 = vmatprep.subr.bf16.mxu0 %v1712
  %2326 = vmatpush1.bf16.msra.mxu0 %v1711
  %2327 = vmatprep.subr.bf16.mxu0 %v1716
  %2328 = vmatpush1.bf16.msra.mxu0 %v1715
  %2329 = vmatprep.subr.bf16.mxu0 %v1720
  %2330 = vmatpush1.bf16.msra.mxu0 %v1719
  %2331 = vmatprep.subr.bf16.mxu0 %v1724
  %2332 = vmatpush1.bf16.msra.mxu0 %v1723
  %2333 = vmatprep.subr.bf16.mxu0 %v1728
  %2334 = vmatpush1.bf16.msra.mxu0 %v1727
  %2335 = vmatprep.subr.bf16.mxu0 %v1732
  %2336 = vmatpush1.bf16.msra.mxu0 %v1731
  %2337 = vmatprep.subr.bf16.mxu0 %v1736
  %2338 = vmatpush1.bf16.msra.mxu0 %v1735
  %2339 = vmatprep.subr.bf16.mxu0 %v1740
  %2340 = vmatpush1.bf16.msra.mxu0 %v1739
  %2341 = vmatprep.subr.bf16.mxu0 %v1744
  %2342 = vmatpush1.bf16.msra.mxu0 %v1743
  %2343 = vmatprep.mubr.bf16.mxu0 %v504
  %2344 = vmatmul.mubr.bf16.gmra.mrb[0].mxu0 %v503
  %v2345 = vpop.f32.mrb[0].mxu0
  %v2346 = vadd.f32 %v2305, %v2345
  %v2347 = vpop.f32.mrb[0].mxu0
  %v2348 = vadd.f32 %v2307, %v2347
  %v2349 = vpop.f32.mrb[0].mxu0
  %v2350 = vpop.f32.mrb[0].mxu0
  %2351 = vdwg.mxu0
  %2352 = vmatprep.subr.bf16.mxu0 %v1748
  %2353 = vmatpush1.bf16.msra.mxu0 %v1747
  %2354 = vmatprep.subr.bf16.mxu0 %v1752
  %2355 = vmatpush1.bf16.msra.mxu0 %v1751
  %2356 = vmatprep.subr.bf16.mxu0 %v1756
  %2357 = vmatpush1.bf16.msra.mxu0 %v1755
  %2358 = vmatprep.subr.bf16.mxu0 %v1760
  %2359 = vmatpush1.bf16.msra.mxu0 %v1759
  %2360 = vmatprep.subr.bf16.mxu0 %v1764
  %2361 = vmatpush1.bf16.msra.mxu0 %v1763
  %2362 = vmatprep.subr.bf16.mxu0 %v1768
  %2363 = vmatpush1.bf16.msra.mxu0 %v1767
  %2364 = vmatprep.subr.bf16.mxu0 %v1772
  %2365 = vmatpush1.bf16.msra.mxu0 %v1771
  %2366 = vmatprep.subr.bf16.mxu0 %v1776
  %2367 = vmatpush1.bf16.msra.mxu0 %v1775
  %2368 = vmatprep.subr.bf16.mxu0 %v1780
  %2369 = vmatpush1.bf16.msra.mxu0 %v1779
  %2370 = vmatprep.subr.bf16.mxu0 %v1784
  %2371 = vmatpush1.bf16.msra.mxu0 %v1783
  %2372 = vmatprep.subr.bf16.mxu0 %v1788
  %2373 = vmatpush1.bf16.msra.mxu0 %v1787
  %2374 = vmatprep.subr.bf16.mxu0 %v1792
  %2375 = vmatpush1.bf16.msra.mxu0 %v1791
  %2376 = vmatprep.subr.bf16.mxu0 %v1796
  %2377 = vmatpush1.bf16.msra.mxu0 %v1795
  %2378 = vmatprep.subr.bf16.mxu0 %v1800
  %2379 = vmatpush1.bf16.msra.mxu0 %v1799
  %2380 = vmatprep.subr.bf16.mxu0 %v1804
  %2381 = vmatpush1.bf16.msra.mxu0 %v1803
  %2382 = vmatprep.subr.bf16.mxu0 %v1808
  %2383 = vmatpush1.bf16.msra.mxu0 %v1807
  %2384 = vmatprep.mubr.bf16.mxu0 %v506
  %2385 = vmatmul.mubr.bf16.gmra.mrb[0].mxu0 %v505
  %v2386 = vpop.f32.mrb[0].mxu0
  %v2387 = vadd.f32 %v2346, %v2386
  %v2388 = vpop.f32.mrb[0].mxu0
  %v2389 = vadd.f32 %v2348, %v2388
  %v2390 = vpop.f32.mrb[0].mxu0
  %v2391 = vpop.f32.mrb[0].mxu0
  %2392 = vdwg.mxu0
  %v2393 = vxor.u32 %v2223, 2147483648
  %v2394 = vxor.u32 %v2225, 2147483648
  %v2395 = vxor.u32 %v2387, 2147483648
  %v2396 = vxor.u32 %v2389, 2147483648
  %v2397 = vmul.f32 %v2393, 1.442695
  %v2398 = vpow.pop %v2397
  %v2399 = vmul.f32 %v2394, 1.442695
  %v2400 = vpow.pop %v2399
  %v2401 = vmul.f32 %v2395, 1.442695
  %v2402 = vpow.pop %v2401
  %v2403 = vmul.f32 %v2396, 1.442695
  %v2404 = vpow.pop %v2403
  %v2405 = vadd.f32 %v2398, 1.0
  %v2406 = vadd.f32 %v2400, 1.0
  %v2407 = vadd.f32 %v2402, 1.0
  %v2408 = vadd.f32 %v2404, 1.0
  %v2409 = vrcp.pop %v2405
  %v2410 = vmul.f32 1.0, %v2409
  %v2411 = vrcp.pop %v2406
  %v2412 = vmul.f32 1.0, %v2411
  %v2413 = vrcp.pop %v2407
  %v2414 = vmul.f32 1.0, %v2413
  %v2415 = vrcp.pop %v2408
  %v2416 = vmul.f32 1.0, %v2415
  %v2417 = vmul.f32 %v2223, %v2410
  %v2418 = vmul.f32 %v2225, %v2412
  %v2419 = vmul.f32 %v2387, %v2414
  %v2420 = vmul.f32 %v2389, %v2416
  %v2421 = vld [vmem:[%s6] sm:$0xf]
  %v2423 = vlaneseq
  %v2424 = vshrl.u32 %v2423, 7
  %v2425 = vsub.s32 0, %v2424
  %v2426 = vrot.slane %v2421, %v2425
  %v2427 = vlaneseq
  %v2428 = vshrl.u32 %v2427, 7
  %v2429 = vsub.s32 1, %v2428
  %v2430 = vrot.slane %v2421, %v2429
  %v2431 = vlaneseq
  %v2432 = vshrl.u32 %v2431, 7
  %v2433 = vsub.s32 2, %v2432
  %v2434 = vrot.slane %v2421, %v2433
  %v2435 = vlaneseq
  %v2436 = vshrl.u32 %v2435, 7
  %v2437 = vsub.s32 3, %v2436
  %v2438 = vrot.slane %v2421, %v2437
  %v2443 = vmul.f32 %v2417, %v2426
  %v2444 = vmul.f32 %v2418, %v2430
  %v2445 = vmul.f32 %v2419, %v2434
  %v2446 = vmul.f32 %v2420, %v2438
  %v2447 = vadd.f32 %v2443, %v2444
  %v2448 = vadd.f32 %v2447, %v2445
  %v2449 = vadd.f32 %v2448, %v2446
  %2450 = vadd.xlane.f32.xlu0 %v2449
  %v2451 = vpop.xlane.xlu0 %2450
  %v2452 = vld [vmem:[#allocation2] sm:$0x1]
  %v2454 = vlaneseq
  %v2455 = vshrl.u32 %v2454, 7
  %v2456 = vsub.s32 0, %v2455
  %v2457 = vrot.slane %v2452, %v2456
  %v2459 = vadd.f32 %v2451, %v2457
  %vm2460 = vcmask 7168
  %2461 = vst.msk [vmem:[%s8] sm:$0xff] %vm2460, %v2459
  // Predicated region
  $region34: #{_lambda_.1} parent=0 // pred_check
    _
  $region35: #{_lambda_.1} parent=0 // pred_check_branch
    %2463 = sbr.rel (0) target = $region37
  $region36: #{_lambda_.1} parent=0 // pred_region
    _
  $region37: #{_lambda_.1} parent=0 // pred_fallthru
    _
  // Predicated region
  $region38: #{_lambda_.1} parent=0 // pred_check
    _
  $region39: #{_lambda_.1} parent=0 // pred_check_branch
    %2465 = sbr.rel (0) target = $region41
  $region40: #{_lambda_.1} parent=0 // pred_region
    _
  $region41: #{_lambda_.1} parent=0 // pred_fallthru
    _

</llo_original>
